<compile_context>
chip_gen: v7x
topology: tpu7x:2x2x1
jax: 0.10.0
libtpu: 0.0.40
codegen_flags: <defaults>
</compile_context>

<pallas_src>
import functools

import jax
import jax.numpy as jnp
from jax.experimental import pallas as pl
from jax.experimental.pallas import tpu as pltpu


def _round_up(x, m):
    return ((x + m - 1) // m) * m


def _cdiv(a, b):
    return -(-a // b)


# ----------------------------------------------------------------------------
# Pallas kernel: 3 fused conv-as-matmul layers + FC, batch tile on the M axis.
# ----------------------------------------------------------------------------
def _feat_kernel(x_ref, t1_ref, b1_ref, t2_ref, b2_ref, t3_ref, b3_ref,
                 wfc_ref, bfc_ref, out_ref):
    def layer(h, t_ref, b_ref):
        acc = jnp.dot(h.astype(t_ref.dtype), t_ref[...],
                      preferred_element_type=jnp.float32)        # (Bt, Cout*Lout) f32
        return jnp.maximum(acc + b_ref[...], 0.0)                 # bias + ReLU in f32

    h = x_ref[...]                                                # (Bt, Lpad) f32
    h = layer(h, t1_ref, b1_ref)                                  # (Bt, 16*L1)
    h = layer(h, t2_ref, b2_ref)                                  # (Bt, 32*L2)
    h = layer(h, t3_ref, b3_ref)                                  # (Bt, 64*L3)
    out = jnp.dot(h.astype(wfc_ref.dtype), wfc_ref[...],
                  preferred_element_type=jnp.float32) + bfc_ref[...]
    out_ref[...] = out                                            # (Bt, latent_pad) lane-dense


# ----------------------------------------------------------------------------
# One-time parameter preparation (hoisted out of the per-call path).
# ----------------------------------------------------------------------------
def _conv_toeplitz(w, b, l_in, stride=2, pad=2, dtype=jnp.bfloat16):
    """w: (Cout, Cin, K) PyTorch layout; b: (Cout,).

    Returns T (Cin*Lin, Cout*Lout) in `dtype`, bias row (1, Cout*Lout) f32, Lout.
    Row order c_in*Lin + i and column order c_out*Lout + t both match PyTorch's
    channel-major flatten; zero padding falls out of the band structure.
    """
    c_out, c_in, k = w.shape
    l_out = (l_in + 2 * pad - k) // stride + 1
    i = jnp.arange(l_in)[:, None, None]           # (Lin, 1, 1)
    t = jnp.arange(l_out)[None, :, None]          # (1, Lout, 1)
    kk = jnp.arange(k)[None, None, :]             # (1, 1, K)
    sel = (i == stride * t + kk - pad).astype(jnp.float32)             # (Lin, Lout, K)
    toep = jnp.einsum('itk,ock->ciot', sel, w.astype(jnp.float32))     # (Cin, Lin, Cout, Lout)
    toep = toep.reshape(c_in * l_in, c_out * l_out).astype(dtype)
    bias = jnp.repeat(b.astype(jnp.float32), l_out)[None, :]           # (1, Cout*Lout)
    return toep, bias, l_out


def prepare_params(params, input_size, latent_dim, matmul_dtype=jnp.bfloat16):
    """Build the Toeplitz matrices and lane-padded FC once. Default: bf16 weights."""
    w1, b1, w2, b2, w3, b3, wfc, bfc = params
    t1, bb1, l1 = _conv_toeplitz(w1, b1, input_size, dtype=matmul_dtype)
    t2, bb2, l2 = _conv_toeplitz(w2, b2, l1, dtype=matmul_dtype)
    t3, bb3, l3 = _conv_toeplitz(w3, b3, l2, dtype=matmul_dtype)

    # Lane-pad the first contraction dim (raw scan length) to a 128-multiple: the input
    # DMA / vld become lane-dense; the extra zero rows of T1 contribute nothing.
    l_in_pad = _round_up(input_size, 128)
    t1 = jnp.pad(t1, ((0, l_in_pad - t1.shape[0]), (0, 0)))

    # Lane-pad the FC output so stores are full-width vst (padding sliced off in wrapper).
    lat_pad = _round_up(latent_dim, 128)
    wfc_t = wfc.T.astype(jnp.float32)                                   # (64*L3, latent)
    wfc_t = jnp.pad(wfc_t, ((0, 0), (0, lat_pad - latent_dim))).astype(matmul_dtype)
    bfc_p = jnp.pad(bfc.astype(jnp.float32), (0, lat_pad - latent_dim))[None, :]
    return (t1, bb1, t2, bb2, t3, bb3, wfc_t, bfc_p)


# ----------------------------------------------------------------------------
# Forward wrapper.
# ----------------------------------------------------------------------------
@functools.partial(jax.jit, static_argnames=("latent_dim", "batch_block", "num_splits"))
def lidar_feature_extractor_pallas(x, prepared, *, latent_dim, batch_block=128,
                                   num_splits=1):
    """x: (B, L) float32. Returns (B, latent_dim) float32.

    batch_block: cap on the batch tile (128 is a good default on v5e/v6e/v7x).
    num_splits:  minimum number of parallel grid steps to aim for (pass 2 on v7x so both
                 TensorCores get a batch slice when B fits in a single tile otherwise).
    """
    t1, bb1, t2, bb2, t3, bb3, wfc_t, bfc_p = prepared
    b, l = x.shape
    l_pad = t1.shape[0]
    lat_pad = wfc_t.shape[1]
    n1, n2, n3 = t1.shape[1], t2.shape[1], t3.shape[1]

    # Batch tile: multiple of 16 (whole bf16 vregs), capped by batch_block, and no larger
    # than cdiv(B, num_splits) so the grid has >= num_splits "parallel" steps.
    rows_per_step = _cdiv(b, max(1, num_splits))
    bt = _round_up(min(max(batch_block, 16), max(rows_per_step, 16)), 16)
    b_pad = _round_up(b, bt)
    xp = jnp.pad(x, ((0, b_pad - b), (0, l_pad - l)))

    def const_spec(arr):
        n = arr.ndim
        return pl.BlockSpec(arr.shape, lambda i, n=n: (0,) * n)

    # Cost hint: 4 matmuls per padded row; bytes = resident weights + x + out.
    const_bytes = sum(int(a.size) * a.dtype.itemsize for a in prepared)
    flops = 2 * b_pad * (l_pad * n1 + n1 * n2 + n2 * n3 + n3 * lat_pad)
    bytes_accessed = (const_bytes + int(xp.size) * xp.dtype.itemsize
                      + b_pad * lat_pad * 4)
    cost = pl.CostEstimate(flops=int(flops), transcendentals=0,
                           bytes_accessed=int(bytes_accessed))

    # Explicit scoped-VMEM budget: (double-buffered) constants + x/out tiles + activations.
    act_bytes = bt * (n1 + n2 + n3) * 4
    vmem_bytes = (2 * const_bytes + 2 * bt * (l_pad + lat_pad) * 4
                  + 2 * act_bytes + (4 << 20))
    vmem_limit = int(min(max(vmem_bytes, 16 << 20), 100 << 20))

    out = pl.pallas_call(
        _feat_kernel,
        out_shape=jax.ShapeDtypeStruct((b_pad, lat_pad), jnp.float32),
        grid=(b_pad // bt,),
        in_specs=[
            pl.BlockSpec((bt, l_pad), lambda i: (i, 0)),
            const_spec(t1), const_spec(bb1),
            const_spec(t2), const_spec(bb2),
            const_spec(t3), const_spec(bb3),
            const_spec(wfc_t), const_spec(bfc_p),
        ],
        out_specs=pl.BlockSpec((bt, lat_pad), lambda i: (i, 0)),
        compiler_params=pltpu.CompilerParams(
            dimension_semantics=("parallel",),
            vmem_limit_bytes=vmem_limit),
        cost_estimate=cost,
    )(xp, t1, bb1, t2, bb2, t3, bb3, wfc_t, bfc_p)

    return out[:b, :latent_dim]


# ----------------------------------------------------------------------------
# Pure-JAX reference (semantics of the PyTorch module).
# ----------------------------------------------------------------------------
def lidar_feature_extractor_ref(x, w1, b1, w2, b2, w3, b3, wfc, bfc):
    h = x[:, None, :]                                             # unsqueeze(1)
    for w, b in ((w1, b1), (w2, b2), (w3, b3)):
        h = jax.lax.conv_general_dilated(
            h, w, window_strides=(2,), padding=[(2, 2)],
            dimension_numbers=('NCH', 'OIH', 'NCH'))
        h = jax.nn.relu(h + b[None, :, None])
    flat = h.reshape(h.shape[0], -1)                              # channel-major flatten
    return flat @ wfc.T + bfc[None, :]


# ----------------------------------------------------------------------------
# Main
# ----------------------------------------------------------------------------
if __name__ == "__main__":
    # Small shapes consistent with the module: input_size=64 (divisible by 8),
    # latent_dim=32, batch=10 (pads to one 16-row tile).
    INPUT_SIZE, LATENT, BATCH = 64, 32, 10
    L3 = INPUT_SIZE // 8

    key = jax.random.PRNGKey(0)
    ks = jax.random.split(key, 10)
    w1 = 0.20 * jax.random.normal(ks[0], (16, 1, 5), jnp.float32)
    b1 = 0.10 * jax.random.normal(ks[1], (16,), jnp.float32)
    w2 = 0.10 * jax.random.normal(ks[2], (32, 16, 5), jnp.float32)
    b2 = 0.10 * jax.random.normal(ks[3], (32,), jnp.float32)
    w3 = 0.05 * jax.random.normal(ks[4], (64, 32, 5), jnp.float32)
    b3 = 0.10 * jax.random.normal(ks[5], (64,), jnp.float32)
    wfc = 0.05 * jax.random.normal(ks[6], (LATENT, 64 * L3), jnp.float32)
    bfc = 0.10 * jax.random.normal(ks[7], (LATENT,), jnp.float32)
    x = jax.random.normal(ks[8], (BATCH, INPUT_SIZE), jnp.float32)

    params = (w1, b1, w2, b2, w3, b3, wfc, bfc)
    ref = lidar_feature_extractor_ref(x, *params)

    # Exact-semantics f32 weight path: tight tolerance.
    prepared_f32 = prepare_params(params, INPUT_SIZE, LATENT, matmul_dtype=jnp.float32)
    out_f32 = jax.block_until_ready(
        lidar_feature_extractor_pallas(x, prepared_f32, latent_dim=LATENT))
    assert out_f32.shape == (BATCH, LATENT)
    assert jnp.allclose(out_f32, ref, rtol=1e-4, atol=1e-4), "f32 path mismatch vs reference"

    # Default bf16 weight path (halves weight DMA, full-rate MXU): loose tolerance.
    prepared_bf16 = prepare_params(params, INPUT_SIZE, LATENT)  # matmul_dtype=bf16 default
    out_bf16 = jax.block_until_ready(
        lidar_feature_extractor_pallas(x, prepared_bf16, latent_dim=LATENT))
    assert out_bf16.shape == (BATCH, LATENT)
    assert jnp.allclose(out_bf16, ref, rtol=5e-2, atol=5e-2), "bf16 path mismatch vs reference"

    print("KERNEL_OK")
</pallas_src>

<mosaic_0001>
module attributes {stable_mosaic.version = 11 : i64} {
  func.func @_feat_kernel(%arg0: i32, %arg1: memref<16x128xf32, #tpu.memory_space<vmem>>, %arg2: memref<128x512xf32, #tpu.memory_space<vmem>>, %arg3: memref<1x512xf32, #tpu.memory_space<vmem>>, %arg4: memref<512x512xf32, #tpu.memory_space<vmem>>, %arg5: memref<1x512xf32, #tpu.memory_space<vmem>>, %arg6: memref<512x512xf32, #tpu.memory_space<vmem>>, %arg7: memref<1x512xf32, #tpu.memory_space<vmem>>, %arg8: memref<512x128xf32, #tpu.memory_space<vmem>>, %arg9: memref<1x128xf32, #tpu.memory_space<vmem>>, %arg10: memref<16x128xf32, #tpu.memory_space<vmem>>) attributes {dimension_semantics = [#tpu.dimension_semantics<parallel>], iteration_bounds = array<i64: 1>, scalar_prefetch = 0 : i64, scratch_operands = 0 : i64, tpu.core_type = #tpu.core_type<tc>, window_params = [{transform_indices = @transform_0, window_bounds = array<i64: 16, 128>}, {pipeline_mode = #tpu.pipeline_mode<synchronous>, transform_indices = @transform_1, window_bounds = array<i64: 128, 512>}, {pipeline_mode = #tpu.pipeline_mode<synchronous>, transform_indices = @transform_2, window_bounds = array<i64: 1, 512>}, {pipeline_mode = #tpu.pipeline_mode<synchronous>, transform_indices = @transform_3, window_bounds = array<i64: 512, 512>}, {pipeline_mode = #tpu.pipeline_mode<synchronous>, transform_indices = @transform_4, window_bounds = array<i64: 1, 512>}, {pipeline_mode = #tpu.pipeline_mode<synchronous>, transform_indices = @transform_5, window_bounds = array<i64: 512, 512>}, {pipeline_mode = #tpu.pipeline_mode<synchronous>, transform_indices = @transform_6, window_bounds = array<i64: 1, 512>}, {pipeline_mode = #tpu.pipeline_mode<synchronous>, transform_indices = @transform_7, window_bounds = array<i64: 512, 128>}, {pipeline_mode = #tpu.pipeline_mode<synchronous>, transform_indices = @transform_8, window_bounds = array<i64: 1, 128>}, {transform_indices = @transform_9, window_bounds = array<i64: 16, 128>}]} {
    %c0 = arith.constant 0 : index
    %c0_0 = arith.constant 0 : index
    %0 = vector.load %arg1[%c0, %c0_0] : memref<16x128xf32, #tpu.memory_space<vmem>>, vector<16x128xf32>
    %c0_1 = arith.constant 0 : index
    %c0_2 = arith.constant 0 : index
    %1 = vector.load %arg2[%c0_1, %c0_2] : memref<128x512xf32, #tpu.memory_space<vmem>>, vector<128x512xf32>
    %cst = arith.constant dense<0.000000e+00> : vector<16x512xf32>
    %2 = tpu.matmul %0, %1, %cst {dimension_numbers = #tpu.dot_dimension_numbers<[1], [0], [0], [1], [0, 0, 1, 1], [], []>} : vector<16x128xf32>, vector<128x512xf32>, vector<16x512xf32> -> vector<16x512xf32>
    %c0_3 = arith.constant 0 : index
    %c0_4 = arith.constant 0 : index
    %3 = vector.load %arg3[%c0_3, %c0_4] : memref<1x512xf32, #tpu.memory_space<vmem>>, vector<1x512xf32>
    %4 = vector.broadcast %3 : vector<1x512xf32> to vector<16x512xf32>
    %5 = arith.addf %2, %4 : vector<16x512xf32>
    %cst_5 = arith.constant 0.000000e+00 : f32
    %6 = vector.broadcast %cst_5 : f32 to vector<16x512xf32>
    %7 = arith.maximumf %5, %6 : vector<16x512xf32>
    %c0_6 = arith.constant 0 : index
    %c0_7 = arith.constant 0 : index
    %8 = vector.load %arg4[%c0_6, %c0_7] : memref<512x512xf32, #tpu.memory_space<vmem>>, vector<512x512xf32>
    %cst_8 = arith.constant dense<0.000000e+00> : vector<16x512xf32>
    %9 = tpu.matmul %7, %8, %cst_8 {dimension_numbers = #tpu.dot_dimension_numbers<[1], [0], [0], [1], [0, 0, 1, 1], [], []>} : vector<16x512xf32>, vector<512x512xf32>, vector<16x512xf32> -> vector<16x512xf32>
    %c0_9 = arith.constant 0 : index
    %c0_10 = arith.constant 0 : index
    %10 = vector.load %arg5[%c0_9, %c0_10] : memref<1x512xf32, #tpu.memory_space<vmem>>, vector<1x512xf32>
    %11 = vector.broadcast %10 : vector<1x512xf32> to vector<16x512xf32>
    %12 = arith.addf %9, %11 : vector<16x512xf32>
    %cst_11 = arith.constant 0.000000e+00 : f32
    %13 = vector.broadcast %cst_11 : f32 to vector<16x512xf32>
    %14 = arith.maximumf %12, %13 : vector<16x512xf32>
    %c0_12 = arith.constant 0 : index
    %c0_13 = arith.constant 0 : index
    %15 = vector.load %arg6[%c0_12, %c0_13] : memref<512x512xf32, #tpu.memory_space<vmem>>, vector<512x512xf32>
    %cst_14 = arith.constant dense<0.000000e+00> : vector<16x512xf32>
    %16 = tpu.matmul %14, %15, %cst_14 {dimension_numbers = #tpu.dot_dimension_numbers<[1], [0], [0], [1], [0, 0, 1, 1], [], []>} : vector<16x512xf32>, vector<512x512xf32>, vector<16x512xf32> -> vector<16x512xf32>
    %c0_15 = arith.constant 0 : index
    %c0_16 = arith.constant 0 : index
    %17 = vector.load %arg7[%c0_15, %c0_16] : memref<1x512xf32, #tpu.memory_space<vmem>>, vector<1x512xf32>
    %18 = vector.broadcast %17 : vector<1x512xf32> to vector<16x512xf32>
    %19 = arith.addf %16, %18 : vector<16x512xf32>
    %cst_17 = arith.constant 0.000000e+00 : f32
    %20 = vector.broadcast %cst_17 : f32 to vector<16x512xf32>
    %21 = arith.maximumf %19, %20 : vector<16x512xf32>
    %c0_18 = arith.constant 0 : index
    %c0_19 = arith.constant 0 : index
    %22 = vector.load %arg8[%c0_18, %c0_19] : memref<512x128xf32, #tpu.memory_space<vmem>>, vector<512x128xf32>
    %cst_20 = arith.constant dense<0.000000e+00> : vector<16x128xf32>
    %23 = tpu.matmul %21, %22, %cst_20 {dimension_numbers = #tpu.dot_dimension_numbers<[1], [0], [0], [1], [0, 0, 1, 1], [], []>} : vector<16x512xf32>, vector<512x128xf32>, vector<16x128xf32> -> vector<16x128xf32>
    %c0_21 = arith.constant 0 : index
    %c0_22 = arith.constant 0 : index
    %24 = vector.load %arg9[%c0_21, %c0_22] : memref<1x128xf32, #tpu.memory_space<vmem>>, vector<1x128xf32>
    %25 = vector.broadcast %24 : vector<1x128xf32> to vector<16x128xf32>
    %26 = arith.addf %23, %25 : vector<16x128xf32>
    %c0_23 = arith.constant 0 : index
    %c0_24 = arith.constant 0 : index
    %27 = vector.load %arg10[%c0_23, %c0_24] : memref<16x128xf32, #tpu.memory_space<vmem>>, vector<16x128xf32>
    tpu.vector_store %arg10[%c0_23, %c0_24], %26 {strides = array<i32>} : memref<16x128xf32, #tpu.memory_space<vmem>>, vector<16x128xf32>,
    return
  }
  func.func @transform_0(%arg0: i32) -> (i32, i32) {
    %c0_i32 = arith.constant 0 : i32
    %c0_i32_0 = arith.constant 0 : i32
    return %arg0, %c0_i32 : i32, i32
  }
  func.func @transform_1(%arg0: i32) -> (i32, i32) {
    %c0_i32 = arith.constant 0 : i32
    %c0_i32_0 = arith.constant 0 : i32
    %c0_i32_1 = arith.constant 0 : i32
    return %c0_i32, %c0_i32_0 : i32, i32
  }
  func.func @transform_2(%arg0: i32) -> (i32, i32) {
    %c0_i32 = arith.constant 0 : i32
    %c0_i32_0 = arith.constant 0 : i32
    %c0_i32_1 = arith.constant 0 : i32
    return %c0_i32, %c0_i32_0 : i32, i32
  }
  func.func @transform_3(%arg0: i32) -> (i32, i32) {
    %c0_i32 = arith.constant 0 : i32
    %c0_i32_0 = arith.constant 0 : i32
    %c0_i32_1 = arith.constant 0 : i32
    return %c0_i32, %c0_i32_0 : i32, i32
  }
  func.func @transform_4(%arg0: i32) -> (i32, i32) {
    %c0_i32 = arith.constant 0 : i32
    %c0_i32_0 = arith.constant 0 : i32
    %c0_i32_1 = arith.constant 0 : i32
    return %c0_i32, %c0_i32_0 : i32, i32
  }
  func.func @transform_5(%arg0: i32) -> (i32, i32) {
    %c0_i32 = arith.constant 0 : i32
    %c0_i32_0 = arith.constant 0 : i32
    %c0_i32_1 = arith.constant 0 : i32
    return %c0_i32, %c0_i32_0 : i32, i32
  }
  func.func @transform_6(%arg0: i32) -> (i32, i32) {
    %c0_i32 = arith.constant 0 : i32
    %c0_i32_0 = arith.constant 0 : i32
    %c0_i32_1 = arith.constant 0 : i32
    return %c0_i32, %c0_i32_0 : i32, i32
  }
  func.func @transform_7(%arg0: i32) -> (i32, i32) {
    %c0_i32 = arith.constant 0 : i32
    %c0_i32_0 = arith.constant 0 : i32
    %c0_i32_1 = arith.constant 0 : i32
    return %c0_i32, %c0_i32_0 : i32, i32
  }
  func.func @transform_8(%arg0: i32) -> (i32, i32) {
    %c0_i32 = arith.constant 0 : i32
    %c0_i32_0 = arith.constant 0 : i32
    %c0_i32_1 = arith.constant 0 : i32
    return %c0_i32, %c0_i32_0 : i32, i32
  }
  func.func @transform_9(%arg0: i32) -> (i32, i32) {
    %c0_i32 = arith.constant 0 : i32
    %c0_i32_0 = arith.constant 0 : i32
    return %arg0, %c0_i32 : i32, i32
  }
}

</mosaic_0001>

<llo_original>
// kernel: lidar_feature_extractor_pallas.1
$region0: #{lidar_feature_extractor_pallas.1}
  #allocation0 [shape = 'u32[]', space=smem, size = 0x4, offset = 0x4, fixed_abs, tag = 'smem constant byte address 0x4 - core index']
  #allocation1 [shape = 'u32[144,128]{1,0:T(1,128)}', space=vmem, size = 0x12000, scoped, tag = 'internal scratch']
  %s0 = inlined_call_operand.vmem [shape: f32[16,128], index: 0, kind: input, shape index: {}]
  %s1 = inlined_call_operand.hbm [shape: f32[128,512], index: 1, kind: input, shape index: {}]
  %s2 = inlined_call_operand.vmem [shape: f32[1,512], index: 2, kind: input, shape index: {}]
  %s3 = inlined_call_operand.hbm [shape: f32[512,512], index: 3, kind: input, shape index: {}]
  %s4 = inlined_call_operand.vmem [shape: f32[1,512], index: 4, kind: input, shape index: {}]
  %s5 = inlined_call_operand.hbm [shape: f32[512,512], index: 5, kind: input, shape index: {}]
  %s6 = inlined_call_operand.vmem [shape: f32[1,512], index: 6, kind: input, shape index: {}]
  %s7 = inlined_call_operand.hbm [shape: f32[512,128], index: 7, kind: input, shape index: {}]
  %s8 = inlined_call_operand.vmem [shape: f32[1,128], index: 8, kind: input, shape index: {}]
  %s9 = inlined_call_operand.hbm [shape: f32[16,128], index: 9, kind: output, shape index: {}]
  %s10 = sld [smem:[#allocation0]]
  $region62: #{lidar_feature_extractor_pallas.1} parent=0
    _
  %s12 = ssub.s32 1, %s10
  %s13 = scalar_select 0, %s12, %s10
  $region1: #{lidar_feature_extractor_pallas.1} parent=0
    #allocation2 [shape = 'u8[262144]{0}', space=vmem, size = 0x40000, scoped, tag = 'input window, operand 1, single buffered']
    #allocation3 [shape = 's32[1]{0}', space=sflag, size = 0x4, scoped, tag = 'scoped memory for lidar_feature_extractor_pallas.1']
    #allocation4 [shape = 's32[1]{0}', space=sflag, size = 0x4, scoped, tag = 'scoped memory for lidar_feature_extractor_pallas.1']
    #allocation5 [shape = 'u8[1048576]{0}', space=vmem, size = 0x100000, scoped, tag = 'input window, operand 3, single buffered']
    #allocation6 [shape = 's32[1]{0}', space=sflag, size = 0x4, scoped, tag = 'scoped memory for lidar_feature_extractor_pallas.1']
    #allocation7 [shape = 'u8[1048576]{0}', space=vmem, size = 0x100000, scoped, tag = 'input window, operand 5, single buffered']
    #allocation8 [shape = 'u8[262144]{0}', space=vmem, size = 0x40000, scoped, tag = 'input window, operand 7, single buffered']
    #allocation9 [shape = 's32[1]{0}', space=sflag, size = 0x4, scoped, tag = 'scoped memory for lidar_feature_extractor_pallas.1']
    #allocation10 [shape = 'u8[8192]{0}', space=vmem, size = 0x2000, scoped, tag = 'output window, operand 0, single buffered']
    %14 = vsyncpa [#allocation3], 0
    %15 = vsyncpa [#allocation6], 0
    %16 = vsyncpa [#allocation9], 0
    %17 = vsyncpa [#allocation4], 0
    // Predicated region
    $region2: #{lidar_feature_extractor_pallas.1} parent=1 // pred_check
      _
    $region3: #{lidar_feature_extractor_pallas.1} parent=1 // pred_check_branch
      %19 = sbr.rel (0) target = $region5
    $region4: #{lidar_feature_extractor_pallas.1} parent=1 // pred_region
      _
    $region5: #{lidar_feature_extractor_pallas.1} parent=1 // pred_fallthru
      _
    // Predicated region
    $region6: #{lidar_feature_extractor_pallas.1} parent=1 // pred_check
      _
    $region7: #{lidar_feature_extractor_pallas.1} parent=1 // pred_check_branch
      %21 = sbr.rel (0) target = $region9
    $region8: #{lidar_feature_extractor_pallas.1} parent=1 // pred_region
      %s23 = ssub.s32 8192, 8192
      %24 = vsyncadd [#allocation3], %s23
      %s25 = sshll.u32 [#allocation2], 4
      %s26 = int_to_ptr.vmem [resolvable:$true] %s25
      %31 = dma.hbm_to_vmem [thread:$0]  %s1, 8192, %s26, [#allocation3], 512, 512, 32
    $region9: #{lidar_feature_extractor_pallas.1} parent=1 // pred_fallthru
      _
    // Predicated region
    $region10: #{lidar_feature_extractor_pallas.1} parent=1 // pred_check
      _
    $region11: #{lidar_feature_extractor_pallas.1} parent=1 // pred_check_branch
      %33 = sbr.rel (0) target = $region13
    $region12: #{lidar_feature_extractor_pallas.1} parent=1 // pred_region
      _
    $region13: #{lidar_feature_extractor_pallas.1} parent=1 // pred_fallthru
      _
    // Predicated region
    $region14: #{lidar_feature_extractor_pallas.1} parent=1 // pred_check
      _
    $region15: #{lidar_feature_extractor_pallas.1} parent=1 // pred_check_branch
      %35 = sbr.rel (0) target = $region17
    $region16: #{lidar_feature_extractor_pallas.1} parent=1 // pred_region
      %s37 = ssub.s32 32768, 32768
      %38 = vsyncadd [#allocation6], %s37
      %s39 = sshll.u32 [#allocation5], 4
      %s40 = int_to_ptr.vmem [resolvable:$true] %s39
      %45 = dma.hbm_to_vmem [thread:$0]  %s3, 32768, %s40, [#allocation6], 512, 512, 32
    $region17: #{lidar_feature_extractor_pallas.1} parent=1 // pred_fallthru
      _
    // Predicated region
    $region18: #{lidar_feature_extractor_pallas.1} parent=1 // pred_check
      _
    $region19: #{lidar_feature_extractor_pallas.1} parent=1 // pred_check_branch
      %47 = sbr.rel (0) target = $region21
    $region20: #{lidar_feature_extractor_pallas.1} parent=1 // pred_region
      _
    $region21: #{lidar_feature_extractor_pallas.1} parent=1 // pred_fallthru
      _
    // Predicated region
    $region22: #{lidar_feature_extractor_pallas.1} parent=1 // pred_check
      _
    $region23: #{lidar_feature_extractor_pallas.1} parent=1 // pred_check_branch
      %49 = sbr.rel (0) target = $region25
    $region24: #{lidar_feature_extractor_pallas.1} parent=1 // pred_region
      %s51 = ssub.s32 32768, 32768
      %52 = vsyncadd [#allocation6], %s51
      %s53 = sshll.u32 [#allocation7], 4
      %s54 = int_to_ptr.vmem [resolvable:$true] %s53
      %59 = dma.hbm_to_vmem [thread:$0]  %s5, 32768, %s54, [#allocation6], 512, 512, 32
    $region25: #{lidar_feature_extractor_pallas.1} parent=1 // pred_fallthru
      _
    // Predicated region
    $region26: #{lidar_feature_extractor_pallas.1} parent=1 // pred_check
      _
    $region27: #{lidar_feature_extractor_pallas.1} parent=1 // pred_check_branch
      %61 = sbr.rel (0) target = $region29
    $region28: #{lidar_feature_extractor_pallas.1} parent=1 // pred_region
      _
    $region29: #{lidar_feature_extractor_pallas.1} parent=1 // pred_fallthru
      _
    // Predicated region
    $region30: #{lidar_feature_extractor_pallas.1} parent=1 // pred_check
      _
    $region31: #{lidar_feature_extractor_pallas.1} parent=1 // pred_check_branch
      %63 = sbr.rel (0) target = $region33
    $region32: #{lidar_feature_extractor_pallas.1} parent=1 // pred_region
      %s65 = ssub.s32 8192, 8192
      %66 = vsyncadd [#allocation9], %s65
      %s67 = sshll.u32 [#allocation8], 4
      %s68 = int_to_ptr.vmem [resolvable:$true] %s67
      %73 = dma.hbm_to_vmem [thread:$0]  %s7, 8192, %s68, [#allocation9], 128, 128, 8
    $region33: #{lidar_feature_extractor_pallas.1} parent=1 // pred_fallthru
      _
    // Predicated region
    $region34: #{lidar_feature_extractor_pallas.1} parent=1 // pred_check
      _
    $region35: #{lidar_feature_extractor_pallas.1} parent=1 // pred_check_branch
      %75 = sbr.rel (0) target = $region37
    $region36: #{lidar_feature_extractor_pallas.1} parent=1 // pred_region
      _
    $region37: #{lidar_feature_extractor_pallas.1} parent=1 // pred_fallthru
      _
    // Predicated region
    $region38: #{lidar_feature_extractor_pallas.1} parent=1 // pred_check
      _
    $region39: #{lidar_feature_extractor_pallas.1} parent=1 // pred_check_branch
      %77 = sbr.rel (0) target = $region41
    $region40: #{lidar_feature_extractor_pallas.1} parent=1 // pred_region
      %78 = dma.done [#allocation3], 8192
    $region41: #{lidar_feature_extractor_pallas.1} parent=1 // pred_fallthru
      _
    // Predicated region
    $region42: #{lidar_feature_extractor_pallas.1} parent=1 // pred_check
      _
    $region43: #{lidar_feature_extractor_pallas.1} parent=1 // pred_check_branch
      %80 = sbr.rel (0) target = $region45
    $region44: #{lidar_feature_extractor_pallas.1} parent=1 // pred_region
      %81 = dma.done [#allocation6], 32768
    $region45: #{lidar_feature_extractor_pallas.1} parent=1 // pred_fallthru
      _
    // Predicated region
    $region46: #{lidar_feature_extractor_pallas.1} parent=1 // pred_check
      _
    $region47: #{lidar_feature_extractor_pallas.1} parent=1 // pred_check_branch
      %83 = sbr.rel (0) target = $region49
    $region48: #{lidar_feature_extractor_pallas.1} parent=1 // pred_region
      %84 = dma.done [#allocation6], 32768
    $region49: #{lidar_feature_extractor_pallas.1} parent=1 // pred_fallthru
      _
    // Predicated region
    $region50: #{lidar_feature_extractor_pallas.1} parent=1 // pred_check
      _
    $region51: #{lidar_feature_extractor_pallas.1} parent=1 // pred_check_branch
      %86 = sbr.rel (0) target = $region53
    $region52: #{lidar_feature_extractor_pallas.1} parent=1 // pred_region
      %87 = dma.done [#allocation9], 8192
    $region53: #{lidar_feature_extractor_pallas.1} parent=1 // pred_fallthru
      _
    %v88 = vld [vmem:[%s0] sm:$0xff]
    %v89 = vld [vmem:[%s0 + $0x8] sm:$0xff]
    %v90 = vld [vmem:[#allocation2] sm:$0xff]
    %v91 = vld [vmem:[#allocation2 + $0x8] sm:$0xff]
    %v92 = vld [vmem:[#allocation2 + $0x10] sm:$0xff]
    %v93 = vld [vmem:[#allocation2 + $0x18] sm:$0xff]
    %v94 = vld [vmem:[#allocation2 + $0x20] sm:$0xff]
    %v95 = vld [vmem:[#allocation2 + $0x28] sm:$0xff]
    %v96 = vld [vmem:[#allocation2 + $0x30] sm:$0xff]
    %v97 = vld [vmem:[#allocation2 + $0x38] sm:$0xff]
    %v98 = vld [vmem:[#allocation2 + $0x40] sm:$0xff]
    %v99 = vld [vmem:[#allocation2 + $0x48] sm:$0xff]
    %v100 = vld [vmem:[#allocation2 + $0x50] sm:$0xff]
    %v101 = vld [vmem:[#allocation2 + $0x58] sm:$0xff]
    %v102 = vld [vmem:[#allocation2 + $0x60] sm:$0xff]
    %v103 = vld [vmem:[#allocation2 + $0x68] sm:$0xff]
    %v104 = vld [vmem:[#allocation2 + $0x70] sm:$0xff]
    %v105 = vld [vmem:[#allocation2 + $0x78] sm:$0xff]
    %v106 = vld [vmem:[#allocation2 + $0x80] sm:$0xff]
    %v107 = vld [vmem:[#allocation2 + $0x88] sm:$0xff]
    %v108 = vld [vmem:[#allocation2 + $0x90] sm:$0xff]
    %v109 = vld [vmem:[#allocation2 + $0x98] sm:$0xff]
    %v110 = vld [vmem:[#allocation2 + $0xa0] sm:$0xff]
    %v111 = vld [vmem:[#allocation2 + $0xa8] sm:$0xff]
    %v112 = vld [vmem:[#allocation2 + $0xb0] sm:$0xff]
    %v113 = vld [vmem:[#allocation2 + $0xb8] sm:$0xff]
    %v114 = vld [vmem:[#allocation2 + $0xc0] sm:$0xff]
    %v115 = vld [vmem:[#allocation2 + $0xc8] sm:$0xff]
    %v116 = vld [vmem:[#allocation2 + $0xd0] sm:$0xff]
    %v117 = vld [vmem:[#allocation2 + $0xd8] sm:$0xff]
    %v118 = vld [vmem:[#allocation2 + $0xe0] sm:$0xff]
    %v119 = vld [vmem:[#allocation2 + $0xe8] sm:$0xff]
    %v120 = vld [vmem:[#allocation2 + $0xf0] sm:$0xff]
    %v121 = vld [vmem:[#allocation2 + $0xf8] sm:$0xff]
    %v122 = vld [vmem:[#allocation2 + $0x100] sm:$0xff]
    %v123 = vld [vmem:[#allocation2 + $0x108] sm:$0xff]
    %v124 = vld [vmem:[#allocation2 + $0x110] sm:$0xff]
    %v125 = vld [vmem:[#allocation2 + $0x118] sm:$0xff]
    %v126 = vld [vmem:[#allocation2 + $0x120] sm:$0xff]
    %v127 = vld [vmem:[#allocation2 + $0x128] sm:$0xff]
    %v128 = vld [vmem:[#allocation2 + $0x130] sm:$0xff]
    %v129 = vld [vmem:[#allocation2 + $0x138] sm:$0xff]
    %v130 = vld [vmem:[#allocation2 + $0x140] sm:$0xff]
    %v131 = vld [vmem:[#allocation2 + $0x148] sm:$0xff]
    %v132 = vld [vmem:[#allocation2 + $0x150] sm:$0xff]
    %v133 = vld [vmem:[#allocation2 + $0x158] sm:$0xff]
    %v134 = vld [vmem:[#allocation2 + $0x160] sm:$0xff]
    %v135 = vld [vmem:[#allocation2 + $0x168] sm:$0xff]
    %v136 = vld [vmem:[#allocation2 + $0x170] sm:$0xff]
    %v137 = vld [vmem:[#allocation2 + $0x178] sm:$0xff]
    %v138 = vld [vmem:[#allocation2 + $0x180] sm:$0xff]
    %v139 = vld [vmem:[#allocation2 + $0x188] sm:$0xff]
    %v140 = vld [vmem:[#allocation2 + $0x190] sm:$0xff]
    %v141 = vld [vmem:[#allocation2 + $0x198] sm:$0xff]
    %v142 = vld [vmem:[#allocation2 + $0x1a0] sm:$0xff]
    %v143 = vld [vmem:[#allocation2 + $0x1a8] sm:$0xff]
    %v144 = vld [vmem:[#allocation2 + $0x1b0] sm:$0xff]
    %v145 = vld [vmem:[#allocation2 + $0x1b8] sm:$0xff]
    %v146 = vld [vmem:[#allocation2 + $0x1c0] sm:$0xff]
    %v147 = vld [vmem:[#allocation2 + $0x1c8] sm:$0xff]
    %v148 = vld [vmem:[#allocation2 + $0x1d0] sm:$0xff]
    %v149 = vld [vmem:[#allocation2 + $0x1d8] sm:$0xff]
    %v150 = vld [vmem:[#allocation2 + $0x1e0] sm:$0xff]
    %v151 = vld [vmem:[#allocation2 + $0x1e8] sm:$0xff]
    %v152 = vld [vmem:[#allocation2 + $0x1f0] sm:$0xff]
    %v153 = vld [vmem:[#allocation2 + $0x1f8] sm:$0xff]
    %v154 = vld [vmem:[%s2] sm:$0xf]
    %v156 = vlaneseq
    %v157 = vshrl.u32 %v156, 7
    %v158 = vsub.s32 0, %v157
    %v159 = vrot.slane %v154, %v158
    %v160 = vlaneseq
    %v161 = vshrl.u32 %v160, 7
    %v162 = vsub.s32 1, %v161
    %v163 = vrot.slane %v154, %v162
    %v164 = vlaneseq
    %v165 = vshrl.u32 %v164, 7
    %v166 = vsub.s32 2, %v165
    %v167 = vrot.slane %v154, %v166
    %v168 = vlaneseq
    %v169 = vshrl.u32 %v168, 7
    %v170 = vsub.s32 3, %v169
    %v171 = vrot.slane %v154, %v170
    %176 = vmatprep.subr.mxu0 %v91
    %177 = vmatpush1.msra.mxu0 %v90
    %178 = vmatprep.subr.mxu0 %v95
    %179 = vmatpush1.msra.mxu0 %v94
    %180 = vmatprep.subr.mxu0 %v99
    %181 = vmatpush1.msra.mxu0 %v98
    %182 = vmatprep.subr.mxu0 %v103
    %183 = vmatpush1.msra.mxu0 %v102
    %184 = vmatprep.subr.mxu0 %v107
    %185 = vmatpush1.msra.mxu0 %v106
    %186 = vmatprep.subr.mxu0 %v111
    %187 = vmatpush1.msra.mxu0 %v110
    %188 = vmatprep.subr.mxu0 %v115
    %189 = vmatpush1.msra.mxu0 %v114
    %190 = vmatprep.subr.mxu0 %v119
    %191 = vmatpush1.msra.mxu0 %v118
    %192 = vmatprep.subr.mxu0 %v123
    %193 = vmatpush1.msra.mxu0 %v122
    %194 = vmatprep.subr.mxu0 %v127
    %195 = vmatpush1.msra.mxu0 %v126
    %196 = vmatprep.subr.mxu0 %v131
    %197 = vmatpush1.msra.mxu0 %v130
    %198 = vmatprep.subr.mxu0 %v135
    %199 = vmatpush1.msra.mxu0 %v134
    %200 = vmatprep.subr.mxu0 %v139
    %201 = vmatpush1.msra.mxu0 %v138
    %202 = vmatprep.subr.mxu0 %v143
    %203 = vmatpush1.msra.mxu0 %v142
    %204 = vmatprep.subr.mxu0 %v147
    %205 = vmatpush1.msra.mxu0 %v146
    %206 = vmatprep.subr.mxu0 %v151
    %207 = vmatpush1.msra.mxu0 %v150
    %208 = vmatprep.subr.mxu0 0.0
    %209 = vmatpush1.msra.mxu0 0.0
    %210 = vmatprep.subr.mxu0 0.0
    %211 = vmatpush1.msra.mxu0 0.0
    %212 = vmatprep.subr.mxu0 0.0
    %213 = vmatpush1.msra.mxu0 0.0
    %214 = vmatprep.subr.mxu0 0.0
    %215 = vmatpush1.msra.mxu0 0.0
    %216 = vmatprep.subr.mxu0 0.0
    %217 = vmatpush1.msra.mxu0 0.0
    %218 = vmatprep.subr.mxu0 0.0
    %219 = vmatpush1.msra.mxu0 0.0
    %220 = vmatprep.subr.mxu0 0.0
    %221 = vmatpush1.msra.mxu0 0.0
    %222 = vmatprep.subr.mxu0 0.0
    %223 = vmatpush1.msra.mxu0 0.0
    %224 = vmatprep.subr.mxu0 0.0
    %225 = vmatpush1.msra.mxu0 0.0
    %226 = vmatprep.subr.mxu0 0.0
    %227 = vmatpush1.msra.mxu0 0.0
    %228 = vmatprep.subr.mxu0 0.0
    %229 = vmatpush1.msra.mxu0 0.0
    %230 = vmatprep.subr.mxu0 0.0
    %231 = vmatpush1.msra.mxu0 0.0
    %232 = vmatprep.subr.mxu0 0.0
    %233 = vmatpush1.msra.mxu0 0.0
    %234 = vmatprep.subr.mxu0 0.0
    %235 = vmatpush1.msra.mxu0 0.0
    %236 = vmatprep.subr.mxu0 0.0
    %237 = vmatpush1.msra.mxu0 0.0
    %238 = vmatprep.subr.mxu0 0.0
    %239 = vmatpush1.msra.mxu0 0.0
    %240 = vmatprep.mubr.f32.mxu0 0.0
    %241 = vmatmul.mubr.f32.gmra.mrb[0].mxu0 %v88
    %v242 = vpop.f32.mrb[0].mxu0
    %v243 = vadd.f32 %v159, %v242
    %v244 = vpop.f32.mrb[0].mxu0
    %v245 = vadd.f32 %v163, %v244
    %246 = vmatprep.mubr.f32.mxu0 0.0
    %247 = vmatmul.mubr.f32.gmra.mrb[0].mxu0 %v89
    %v248 = vpop.f32.mrb[0].mxu0
    %v249 = vadd.f32 %v159, %v248
    %v250 = vpop.f32.mrb[0].mxu0
    %v251 = vadd.f32 %v163, %v250
    %252 = vdwg.mxu0
    %253 = vmatprep.subr.mxu0 %v93
    %254 = vmatpush1.msra.mxu0 %v92
    %255 = vmatprep.subr.mxu0 %v97
    %256 = vmatpush1.msra.mxu0 %v96
    %257 = vmatprep.subr.mxu0 %v101
    %258 = vmatpush1.msra.mxu0 %v100
    %259 = vmatprep.subr.mxu0 %v105
    %260 = vmatpush1.msra.mxu0 %v104
    %261 = vmatprep.subr.mxu0 %v109
    %262 = vmatpush1.msra.mxu0 %v108
    %263 = vmatprep.subr.mxu0 %v113
    %264 = vmatpush1.msra.mxu0 %v112
    %265 = vmatprep.subr.mxu0 %v117
    %266 = vmatpush1.msra.mxu0 %v116
    %267 = vmatprep.subr.mxu0 %v121
    %268 = vmatpush1.msra.mxu0 %v120
    %269 = vmatprep.subr.mxu0 %v125
    %270 = vmatpush1.msra.mxu0 %v124
    %271 = vmatprep.subr.mxu0 %v129
    %272 = vmatpush1.msra.mxu0 %v128
    %273 = vmatprep.subr.mxu0 %v133
    %274 = vmatpush1.msra.mxu0 %v132
    %275 = vmatprep.subr.mxu0 %v137
    %276 = vmatpush1.msra.mxu0 %v136
    %277 = vmatprep.subr.mxu0 %v141
    %278 = vmatpush1.msra.mxu0 %v140
    %279 = vmatprep.subr.mxu0 %v145
    %280 = vmatpush1.msra.mxu0 %v144
    %281 = vmatprep.subr.mxu0 %v149
    %282 = vmatpush1.msra.mxu0 %v148
    %283 = vmatprep.subr.mxu0 %v153
    %284 = vmatpush1.msra.mxu0 %v152
    %285 = vmatprep.subr.mxu0 0.0
    %286 = vmatpush1.msra.mxu0 0.0
    %287 = vmatprep.subr.mxu0 0.0
    %288 = vmatpush1.msra.mxu0 0.0
    %289 = vmatprep.subr.mxu0 0.0
    %290 = vmatpush1.msra.mxu0 0.0
    %291 = vmatprep.subr.mxu0 0.0
    %292 = vmatpush1.msra.mxu0 0.0
    %293 = vmatprep.subr.mxu0 0.0
    %294 = vmatpush1.msra.mxu0 0.0
    %295 = vmatprep.subr.mxu0 0.0
    %296 = vmatpush1.msra.mxu0 0.0
    %297 = vmatprep.subr.mxu0 0.0
    %298 = vmatpush1.msra.mxu0 0.0
    %299 = vmatprep.subr.mxu0 0.0
    %300 = vmatpush1.msra.mxu0 0.0
    %301 = vmatprep.subr.mxu0 0.0
    %302 = vmatpush1.msra.mxu0 0.0
    %303 = vmatprep.subr.mxu0 0.0
    %304 = vmatpush1.msra.mxu0 0.0
    %305 = vmatprep.subr.mxu0 0.0
    %306 = vmatpush1.msra.mxu0 0.0
    %307 = vmatprep.subr.mxu0 0.0
    %308 = vmatpush1.msra.mxu0 0.0
    %309 = vmatprep.subr.mxu0 0.0
    %310 = vmatpush1.msra.mxu0 0.0
    %311 = vmatprep.subr.mxu0 0.0
    %312 = vmatpush1.msra.mxu0 0.0
    %313 = vmatprep.subr.mxu0 0.0
    %314 = vmatpush1.msra.mxu0 0.0
    %315 = vmatprep.subr.mxu0 0.0
    %316 = vmatpush1.msra.mxu0 0.0
    %317 = vmatprep.mubr.f32.mxu0 0.0
    %318 = vmatmul.mubr.f32.gmra.mrb[0].mxu0 %v88
    %v319 = vpop.f32.mrb[0].mxu0
    %v320 = vadd.f32 %v167, %v319
    %v321 = vpop.f32.mrb[0].mxu0
    %v322 = vadd.f32 %v171, %v321
    %323 = vmatprep.mubr.f32.mxu0 0.0
    %324 = vmatmul.mubr.f32.gmra.mrb[0].mxu0 %v89
    %v325 = vpop.f32.mrb[0].mxu0
    %v326 = vadd.f32 %v167, %v325
    %v327 = vpop.f32.mrb[0].mxu0
    %v328 = vadd.f32 %v171, %v327
    %329 = vdwg.mxu0
    %v330 = vmax.f32 %v243, 0.0
    %v331 = vmax.f32 %v245, 0.0
    %v332 = vmax.f32 %v320, 0.0
    %v333 = vmax.f32 %v322, 0.0
    %v334 = vmax.f32 %v249, 0.0
    %v335 = vmax.f32 %v251, 0.0
    %v336 = vmax.f32 %v326, 0.0
    %v337 = vmax.f32 %v328, 0.0
    %v338 = vld [vmem:[#allocation5] sm:$0xff]
    %v339 = vld [vmem:[#allocation5 + $0x8] sm:$0xff]
    %v340 = vld [vmem:[#allocation5 + $0x10] sm:$0xff]
    %v341 = vld [vmem:[#allocation5 + $0x18] sm:$0xff]
    %v342 = vld [vmem:[#allocation5 + $0x20] sm:$0xff]
    %v343 = vld [vmem:[#allocation5 + $0x28] sm:$0xff]
    %v344 = vld [vmem:[#allocation5 + $0x30] sm:$0xff]
    %v345 = vld [vmem:[#allocation5 + $0x38] sm:$0xff]
    %v346 = vld [vmem:[#allocation5 + $0x40] sm:$0xff]
    %v347 = vld [vmem:[#allocation5 + $0x48] sm:$0xff]
    %v348 = vld [vmem:[#allocation5 + $0x50] sm:$0xff]
    %v349 = vld [vmem:[#allocation5 + $0x58] sm:$0xff]
    %v350 = vld [vmem:[#allocation5 + $0x60] sm:$0xff]
    %v351 = vld [vmem:[#allocation5 + $0x68] sm:$0xff]
    %v352 = vld [vmem:[#allocation5 + $0x70] sm:$0xff]
    %v353 = vld [vmem:[#allocation5 + $0x78] sm:$0xff]
    %v354 = vld [vmem:[#allocation5 + $0x80] sm:$0xff]
    %v355 = vld [vmem:[#allocation5 + $0x88] sm:$0xff]
    %v356 = vld [vmem:[#allocation5 + $0x90] sm:$0xff]
    %v357 = vld [vmem:[#allocation5 + $0x98] sm:$0xff]
    %v358 = vld [vmem:[#allocation5 + $0xa0] sm:$0xff]
    %v359 = vld [vmem:[#allocation5 + $0xa8] sm:$0xff]
    %v360 = vld [vmem:[#allocation5 + $0xb0] sm:$0xff]
    %v361 = vld [vmem:[#allocation5 + $0xb8] sm:$0xff]
    %v362 = vld [vmem:[#allocation5 + $0xc0] sm:$0xff]
    %v363 = vld [vmem:[#allocation5 + $0xc8] sm:$0xff]
    %v364 = vld [vmem:[#allocation5 + $0xd0] sm:$0xff]
    %v365 = vld [vmem:[#allocation5 + $0xd8] sm:$0xff]
    %v366 = vld [vmem:[#allocation5 + $0xe0] sm:$0xff]
    %v367 = vld [vmem:[#allocation5 + $0xe8] sm:$0xff]
    %v368 = vld [vmem:[#allocation5 + $0xf0] sm:$0xff]
    %v369 = vld [vmem:[#allocation5 + $0xf8] sm:$0xff]
    %v370 = vld [vmem:[#allocation5 + $0x100] sm:$0xff]
    %v371 = vld [vmem:[#allocation5 + $0x108] sm:$0xff]
    %v372 = vld [vmem:[#allocation5 + $0x110] sm:$0xff]
    %v373 = vld [vmem:[#allocation5 + $0x118] sm:$0xff]
    %v374 = vld [vmem:[#allocation5 + $0x120] sm:$0xff]
    %v375 = vld [vmem:[#allocation5 + $0x128] sm:$0xff]
    %v376 = vld [vmem:[#allocation5 + $0x130] sm:$0xff]
    %v377 = vld [vmem:[#allocation5 + $0x138] sm:$0xff]
    %v378 = vld [vmem:[#allocation5 + $0x140] sm:$0xff]
    %v379 = vld [vmem:[#allocation5 + $0x148] sm:$0xff]
    %v380 = vld [vmem:[#allocation5 + $0x150] sm:$0xff]
    %v381 = vld [vmem:[#allocation5 + $0x158] sm:$0xff]
    %v382 = vld [vmem:[#allocation5 + $0x160] sm:$0xff]
    %v383 = vld [vmem:[#allocation5 + $0x168] sm:$0xff]
    %v384 = vld [vmem:[#allocation5 + $0x170] sm:$0xff]
    %v385 = vld [vmem:[#allocation5 + $0x178] sm:$0xff]
    %v386 = vld [vmem:[#allocation5 + $0x180] sm:$0xff]
    %v387 = vld [vmem:[#allocation5 + $0x188] sm:$0xff]
    %v388 = vld [vmem:[#allocation5 + $0x190] sm:$0xff]
    %v389 = vld [vmem:[#allocation5 + $0x198] sm:$0xff]
    %v390 = vld [vmem:[#allocation5 + $0x1a0] sm:$0xff]
    %v391 = vld [vmem:[#allocation5 + $0x1a8] sm:$0xff]
    %v392 = vld [vmem:[#allocation5 + $0x1b0] sm:$0xff]
    %v393 = vld [vmem:[#allocation5 + $0x1b8] sm:$0xff]
    %v394 = vld [vmem:[#allocation5 + $0x1c0] sm:$0xff]
    %v395 = vld [vmem:[#allocation5 + $0x1c8] sm:$0xff]
    %v396 = vld [vmem:[#allocation5 + $0x1d0] sm:$0xff]
    %v397 = vld [vmem:[#allocation5 + $0x1d8] sm:$0xff]
    %v398 = vld [vmem:[#allocation5 + $0x1e0] sm:$0xff]
    %v399 = vld [vmem:[#allocation5 + $0x1e8] sm:$0xff]
    %v400 = vld [vmem:[#allocation5 + $0x1f0] sm:$0xff]
    %v401 = vld [vmem:[#allocation5 + $0x1f8] sm:$0xff]
    %v402 = vld [vmem:[#allocation5 + $0x200] sm:$0xff]
    %v403 = vld [vmem:[#allocation5 + $0x208] sm:$0xff]
    %v404 = vld [vmem:[#allocation5 + $0x210] sm:$0xff]
    %v405 = vld [vmem:[#allocation5 + $0x218] sm:$0xff]
    %v406 = vld [vmem:[#allocation5 + $0x220] sm:$0xff]
    %v407 = vld [vmem:[#allocation5 + $0x228] sm:$0xff]
    %v408 = vld [vmem:[#allocation5 + $0x230] sm:$0xff]
    %v409 = vld [vmem:[#allocation5 + $0x238] sm:$0xff]
    %v410 = vld [vmem:[#allocation5 + $0x240] sm:$0xff]
    %v411 = vld [vmem:[#allocation5 + $0x248] sm:$0xff]
    %v412 = vld [vmem:[#allocation5 + $0x250] sm:$0xff]
    %v413 = vld [vmem:[#allocation5 + $0x258] sm:$0xff]
    %v414 = vld [vmem:[#allocation5 + $0x260] sm:$0xff]
    %v415 = vld [vmem:[#allocation5 + $0x268] sm:$0xff]
    %v416 = vld [vmem:[#allocation5 + $0x270] sm:$0xff]
    %v417 = vld [vmem:[#allocation5 + $0x278] sm:$0xff]
    %v418 = vld [vmem:[#allocation5 + $0x280] sm:$0xff]
    %v419 = vld [vmem:[#allocation5 + $0x288] sm:$0xff]
    %v420 = vld [vmem:[#allocation5 + $0x290] sm:$0xff]
    %v421 = vld [vmem:[#allocation5 + $0x298] sm:$0xff]
    %v422 = vld [vmem:[#allocation5 + $0x2a0] sm:$0xff]
    %v423 = vld [vmem:[#allocation5 + $0x2a8] sm:$0xff]
    %v424 = vld [vmem:[#allocation5 + $0x2b0] sm:$0xff]
    %v425 = vld [vmem:[#allocation5 + $0x2b8] sm:$0xff]
    %v426 = vld [vmem:[#allocation5 + $0x2c0] sm:$0xff]
    %v427 = vld [vmem:[#allocation5 + $0x2c8] sm:$0xff]
    %v428 = vld [vmem:[#allocation5 + $0x2d0] sm:$0xff]
    %v429 = vld [vmem:[#allocation5 + $0x2d8] sm:$0xff]
    %v430 = vld [vmem:[#allocation5 + $0x2e0] sm:$0xff]
    %v431 = vld [vmem:[#allocation5 + $0x2e8] sm:$0xff]
    %v432 = vld [vmem:[#allocation5 + $0x2f0] sm:$0xff]
    %v433 = vld [vmem:[#allocation5 + $0x2f8] sm:$0xff]
    %v434 = vld [vmem:[#allocation5 + $0x300] sm:$0xff]
    %v435 = vld [vmem:[#allocation5 + $0x308] sm:$0xff]
    %v436 = vld [vmem:[#allocation5 + $0x310] sm:$0xff]
    %v437 = vld [vmem:[#allocation5 + $0x318] sm:$0xff]
    %v438 = vld [vmem:[#allocation5 + $0x320] sm:$0xff]
    %v439 = vld [vmem:[#allocation5 + $0x328] sm:$0xff]
    %v440 = vld [vmem:[#allocation5 + $0x330] sm:$0xff]
    %v441 = vld [vmem:[#allocation5 + $0x338] sm:$0xff]
    %v442 = vld [vmem:[#allocation5 + $0x340] sm:$0xff]
    %v443 = vld [vmem:[#allocation5 + $0x348] sm:$0xff]
    %v444 = vld [vmem:[#allocation5 + $0x350] sm:$0xff]
    %v445 = vld [vmem:[#allocation5 + $0x358] sm:$0xff]
    %v446 = vld [vmem:[#allocation5 + $0x360] sm:$0xff]
    %v447 = vld [vmem:[#allocation5 + $0x368] sm:$0xff]
    %v448 = vld [vmem:[#allocation5 + $0x370] sm:$0xff]
    %v449 = vld [vmem:[#allocation5 + $0x378] sm:$0xff]
    %v450 = vld [vmem:[#allocation5 + $0x380] sm:$0xff]
    %v451 = vld [vmem:[#allocation5 + $0x388] sm:$0xff]
    %v452 = vld [vmem:[#allocation5 + $0x390] sm:$0xff]
    %v453 = vld [vmem:[#allocation5 + $0x398] sm:$0xff]
    %v454 = vld [vmem:[#allocation5 + $0x3a0] sm:$0xff]
    %v455 = vld [vmem:[#allocation5 + $0x3a8] sm:$0xff]
    %v456 = vld [vmem:[#allocation5 + $0x3b0] sm:$0xff]
    %v457 = vld [vmem:[#allocation5 + $0x3b8] sm:$0xff]
    %v458 = vld [vmem:[#allocation5 + $0x3c0] sm:$0xff]
    %v459 = vld [vmem:[#allocation5 + $0x3c8] sm:$0xff]
    %v460 = vld [vmem:[#allocation5 + $0x3d0] sm:$0xff]
    %v461 = vld [vmem:[#allocation5 + $0x3d8] sm:$0xff]
    %v462 = vld [vmem:[#allocation5 + $0x3e0] sm:$0xff]
    %v463 = vld [vmem:[#allocation5 + $0x3e8] sm:$0xff]
    %v464 = vld [vmem:[#allocation5 + $0x3f0] sm:$0xff]
    %v465 = vld [vmem:[#allocation5 + $0x3f8] sm:$0xff]
    %v466 = vld [vmem:[#allocation5 + $0x400] sm:$0xff]
    %v467 = vld [vmem:[#allocation5 + $0x408] sm:$0xff]
    %v468 = vld [vmem:[#allocation5 + $0x410] sm:$0xff]
    %v469 = vld [vmem:[#allocation5 + $0x418] sm:$0xff]
    %v470 = vld [vmem:[#allocation5 + $0x420] sm:$0xff]
    %v471 = vld [vmem:[#allocation5 + $0x428] sm:$0xff]
    %v472 = vld [vmem:[#allocation5 + $0x430] sm:$0xff]
    %v473 = vld [vmem:[#allocation5 + $0x438] sm:$0xff]
    %v474 = vld [vmem:[#allocation5 + $0x440] sm:$0xff]
    %v475 = vld [vmem:[#allocation5 + $0x448] sm:$0xff]
    %v476 = vld [vmem:[#allocation5 + $0x450] sm:$0xff]
    %v477 = vld [vmem:[#allocation5 + $0x458] sm:$0xff]
    %v478 = vld [vmem:[#allocation5 + $0x460] sm:$0xff]
    %v479 = vld [vmem:[#allocation5 + $0x468] sm:$0xff]
    %v480 = vld [vmem:[#allocation5 + $0x470] sm:$0xff]
    %v481 = vld [vmem:[#allocation5 + $0x478] sm:$0xff]
    %v482 = vld [vmem:[#allocation5 + $0x480] sm:$0xff]
    %v483 = vld [vmem:[#allocation5 + $0x488] sm:$0xff]
    %v484 = vld [vmem:[#allocation5 + $0x490] sm:$0xff]
    %v485 = vld [vmem:[#allocation5 + $0x498] sm:$0xff]
    %v486 = vld [vmem:[#allocation5 + $0x4a0] sm:$0xff]
    %v487 = vld [vmem:[#allocation5 + $0x4a8] sm:$0xff]
    %v488 = vld [vmem:[#allocation5 + $0x4b0] sm:$0xff]
    %v489 = vld [vmem:[#allocation5 + $0x4b8] sm:$0xff]
    %v490 = vld [vmem:[#allocation5 + $0x4c0] sm:$0xff]
    %v491 = vld [vmem:[#allocation5 + $0x4c8] sm:$0xff]
    %v492 = vld [vmem:[#allocation5 + $0x4d0] sm:$0xff]
    %v493 = vld [vmem:[#allocation5 + $0x4d8] sm:$0xff]
    %v494 = vld [vmem:[#allocation5 + $0x4e0] sm:$0xff]
    %v495 = vld [vmem:[#allocation5 + $0x4e8] sm:$0xff]
    %v496 = vld [vmem:[#allocation5 + $0x4f0] sm:$0xff]
    %v497 = vld [vmem:[#allocation5 + $0x4f8] sm:$0xff]
    %v498 = vld [vmem:[#allocation5 + $0x500] sm:$0xff]
    %v499 = vld [vmem:[#allocation5 + $0x508] sm:$0xff]
    %v500 = vld [vmem:[#allocation5 + $0x510] sm:$0xff]
    %v501 = vld [vmem:[#allocation5 + $0x518] sm:$0xff]
    %v502 = vld [vmem:[#allocation5 + $0x520] sm:$0xff]
    %v503 = vld [vmem:[#allocation5 + $0x528] sm:$0xff]
    %v504 = vld [vmem:[#allocation5 + $0x530] sm:$0xff]
    %v505 = vld [vmem:[#allocation5 + $0x538] sm:$0xff]
    %v506 = vld [vmem:[#allocation5 + $0x540] sm:$0xff]
    %v507 = vld [vmem:[#allocation5 + $0x548] sm:$0xff]
    %v508 = vld [vmem:[#allocation5 + $0x550] sm:$0xff]
    %v509 = vld [vmem:[#allocation5 + $0x558] sm:$0xff]
    %v510 = vld [vmem:[#allocation5 + $0x560] sm:$0xff]
    %v511 = vld [vmem:[#allocation5 + $0x568] sm:$0xff]
    %v512 = vld [vmem:[#allocation5 + $0x570] sm:$0xff]
    %v513 = vld [vmem:[#allocation5 + $0x578] sm:$0xff]
    %v514 = vld [vmem:[#allocation5 + $0x580] sm:$0xff]
    %v515 = vld [vmem:[#allocation5 + $0x588] sm:$0xff]
    %v516 = vld [vmem:[#allocation5 + $0x590] sm:$0xff]
    %v517 = vld [vmem:[#allocation5 + $0x598] sm:$0xff]
    %v518 = vld [vmem:[#allocation5 + $0x5a0] sm:$0xff]
    %v519 = vld [vmem:[#allocation5 + $0x5a8] sm:$0xff]
    %v520 = vld [vmem:[#allocation5 + $0x5b0] sm:$0xff]
    %v521 = vld [vmem:[#allocation5 + $0x5b8] sm:$0xff]
    %v522 = vld [vmem:[#allocation5 + $0x5c0] sm:$0xff]
    %v523 = vld [vmem:[#allocation5 + $0x5c8] sm:$0xff]
    %v524 = vld [vmem:[#allocation5 + $0x5d0] sm:$0xff]
    %v525 = vld [vmem:[#allocation5 + $0x5d8] sm:$0xff]
    %v526 = vld [vmem:[#allocation5 + $0x5e0] sm:$0xff]
    %v527 = vld [vmem:[#allocation5 + $0x5e8] sm:$0xff]
    %v528 = vld [vmem:[#allocation5 + $0x5f0] sm:$0xff]
    %v529 = vld [vmem:[#allocation5 + $0x5f8] sm:$0xff]
    %v530 = vld [vmem:[#allocation5 + $0x600] sm:$0xff]
    %v531 = vld [vmem:[#allocation5 + $0x608] sm:$0xff]
    %v532 = vld [vmem:[#allocation5 + $0x610] sm:$0xff]
    %v533 = vld [vmem:[#allocation5 + $0x618] sm:$0xff]
    %v534 = vld [vmem:[#allocation5 + $0x620] sm:$0xff]
    %v535 = vld [vmem:[#allocation5 + $0x628] sm:$0xff]
    %v536 = vld [vmem:[#allocation5 + $0x630] sm:$0xff]
    %v537 = vld [vmem:[#allocation5 + $0x638] sm:$0xff]
    %v538 = vld [vmem:[#allocation5 + $0x640] sm:$0xff]
    %v539 = vld [vmem:[#allocation5 + $0x648] sm:$0xff]
    %v540 = vld [vmem:[#allocation5 + $0x650] sm:$0xff]
    %v541 = vld [vmem:[#allocation5 + $0x658] sm:$0xff]
    %v542 = vld [vmem:[#allocation5 + $0x660] sm:$0xff]
    %v543 = vld [vmem:[#allocation5 + $0x668] sm:$0xff]
    %v544 = vld [vmem:[#allocation5 + $0x670] sm:$0xff]
    %v545 = vld [vmem:[#allocation5 + $0x678] sm:$0xff]
    %v546 = vld [vmem:[#allocation5 + $0x680] sm:$0xff]
    %v547 = vld [vmem:[#allocation5 + $0x688] sm:$0xff]
    %v548 = vld [vmem:[#allocation5 + $0x690] sm:$0xff]
    %v549 = vld [vmem:[#allocation5 + $0x698] sm:$0xff]
    %v550 = vld [vmem:[#allocation5 + $0x6a0] sm:$0xff]
    %v551 = vld [vmem:[#allocation5 + $0x6a8] sm:$0xff]
    %v552 = vld [vmem:[#allocation5 + $0x6b0] sm:$0xff]
    %v553 = vld [vmem:[#allocation5 + $0x6b8] sm:$0xff]
    %v554 = vld [vmem:[#allocation5 + $0x6c0] sm:$0xff]
    %v555 = vld [vmem:[#allocation5 + $0x6c8] sm:$0xff]
    %v556 = vld [vmem:[#allocation5 + $0x6d0] sm:$0xff]
    %v557 = vld [vmem:[#allocation5 + $0x6d8] sm:$0xff]
    %v558 = vld [vmem:[#allocation5 + $0x6e0] sm:$0xff]
    %v559 = vld [vmem:[#allocation5 + $0x6e8] sm:$0xff]
    %v560 = vld [vmem:[#allocation5 + $0x6f0] sm:$0xff]
    %v561 = vld [vmem:[#allocation5 + $0x6f8] sm:$0xff]
    %v562 = vld [vmem:[#allocation5 + $0x700] sm:$0xff]
    %v563 = vld [vmem:[#allocation5 + $0x708] sm:$0xff]
    %v564 = vld [vmem:[#allocation5 + $0x710] sm:$0xff]
    %v565 = vld [vmem:[#allocation5 + $0x718] sm:$0xff]
    %v566 = vld [vmem:[#allocation5 + $0x720] sm:$0xff]
    %v567 = vld [vmem:[#allocation5 + $0x728] sm:$0xff]
    %v568 = vld [vmem:[#allocation5 + $0x730] sm:$0xff]
    %v569 = vld [vmem:[#allocation5 + $0x738] sm:$0xff]
    %v570 = vld [vmem:[#allocation5 + $0x740] sm:$0xff]
    %v571 = vld [vmem:[#allocation5 + $0x748] sm:$0xff]
    %v572 = vld [vmem:[#allocation5 + $0x750] sm:$0xff]
    %v573 = vld [vmem:[#allocation5 + $0x758] sm:$0xff]
    %v574 = vld [vmem:[#allocation5 + $0x760] sm:$0xff]
    %v575 = vld [vmem:[#allocation5 + $0x768] sm:$0xff]
    %v576 = vld [vmem:[#allocation5 + $0x770] sm:$0xff]
    %v577 = vld [vmem:[#allocation5 + $0x778] sm:$0xff]
    %v578 = vld [vmem:[#allocation5 + $0x780] sm:$0xff]
    %v579 = vld [vmem:[#allocation5 + $0x788] sm:$0xff]
    %v580 = vld [vmem:[#allocation5 + $0x790] sm:$0xff]
    %v581 = vld [vmem:[#allocation5 + $0x798] sm:$0xff]
    %v582 = vld [vmem:[#allocation5 + $0x7a0] sm:$0xff]
    %v583 = vld [vmem:[#allocation5 + $0x7a8] sm:$0xff]
    %v584 = vld [vmem:[#allocation5 + $0x7b0] sm:$0xff]
    %v585 = vld [vmem:[#allocation5 + $0x7b8] sm:$0xff]
    %v586 = vld [vmem:[#allocation5 + $0x7c0] sm:$0xff]
    %v587 = vld [vmem:[#allocation5 + $0x7c8] sm:$0xff]
    %v588 = vld [vmem:[#allocation5 + $0x7d0] sm:$0xff]
    %v589 = vld [vmem:[#allocation5 + $0x7d8] sm:$0xff]
    %v590 = vld [vmem:[#allocation5 + $0x7e0] sm:$0xff]
    %v591 = vld [vmem:[#allocation5 + $0x7e8] sm:$0xff]
    %v592 = vld [vmem:[#allocation5 + $0x7f0] sm:$0xff]
    %v593 = vld [vmem:[#allocation5 + $0x7f8] sm:$0xff]
    %v594 = vld [vmem:[%s4] sm:$0xf]
    %v596 = vlaneseq
    %v597 = vshrl.u32 %v596, 7
    %v598 = vsub.s32 0, %v597
    %v599 = vrot.slane %v594, %v598
    %v600 = vlaneseq
    %v601 = vshrl.u32 %v600, 7
    %v602 = vsub.s32 1, %v601
    %v603 = vrot.slane %v594, %v602
    %v604 = vlaneseq
    %v605 = vshrl.u32 %v604, 7
    %v606 = vsub.s32 2, %v605
    %v607 = vrot.slane %v594, %v606
    %v608 = vlaneseq
    %v609 = vshrl.u32 %v608, 7
    %v610 = vsub.s32 3, %v609
    %v611 = vrot.slane %v594, %v610
    %616 = vmatprep.subr.mxu0 %v339
    %617 = vmatpush1.msra.mxu0 %v338
    %618 = vmatprep.subr.mxu0 %v343
    %619 = vmatpush1.msra.mxu0 %v342
    %620 = vmatprep.subr.mxu0 %v347
    %621 = vmatpush1.msra.mxu0 %v346
    %622 = vmatprep.subr.mxu0 %v351
    %623 = vmatpush1.msra.mxu0 %v350
    %624 = vmatprep.subr.mxu0 %v355
    %625 = vmatpush1.msra.mxu0 %v354
    %626 = vmatprep.subr.mxu0 %v359
    %627 = vmatpush1.msra.mxu0 %v358
    %628 = vmatprep.subr.mxu0 %v363
    %629 = vmatpush1.msra.mxu0 %v362
    %630 = vmatprep.subr.mxu0 %v367
    %631 = vmatpush1.msra.mxu0 %v366
    %632 = vmatprep.subr.mxu0 %v371
    %633 = vmatpush1.msra.mxu0 %v370
    %634 = vmatprep.subr.mxu0 %v375
    %635 = vmatpush1.msra.mxu0 %v374
    %636 = vmatprep.subr.mxu0 %v379
    %637 = vmatpush1.msra.mxu0 %v378
    %638 = vmatprep.subr.mxu0 %v383
    %639 = vmatpush1.msra.mxu0 %v382
    %640 = vmatprep.subr.mxu0 %v387
    %641 = vmatpush1.msra.mxu0 %v386
    %642 = vmatprep.subr.mxu0 %v391
    %643 = vmatpush1.msra.mxu0 %v390
    %644 = vmatprep.subr.mxu0 %v395
    %645 = vmatpush1.msra.mxu0 %v394
    %646 = vmatprep.subr.mxu0 %v399
    %647 = vmatpush1.msra.mxu0 %v398
    %648 = vmatprep.subr.mxu0 %v403
    %649 = vmatpush1.msra.mxu0 %v402
    %650 = vmatprep.subr.mxu0 %v407
    %651 = vmatpush1.msra.mxu0 %v406
    %652 = vmatprep.subr.mxu0 %v411
    %653 = vmatpush1.msra.mxu0 %v410
    %654 = vmatprep.subr.mxu0 %v415
    %655 = vmatpush1.msra.mxu0 %v414
    %656 = vmatprep.subr.mxu0 %v419
    %657 = vmatpush1.msra.mxu0 %v418
    %658 = vmatprep.subr.mxu0 %v423
    %659 = vmatpush1.msra.mxu0 %v422
    %660 = vmatprep.subr.mxu0 %v427
    %661 = vmatpush1.msra.mxu0 %v426
    %662 = vmatprep.subr.mxu0 %v431
    %663 = vmatpush1.msra.mxu0 %v430
    %664 = vmatprep.subr.mxu0 %v435
    %665 = vmatpush1.msra.mxu0 %v434
    %666 = vmatprep.subr.mxu0 %v439
    %667 = vmatpush1.msra.mxu0 %v438
    %668 = vmatprep.subr.mxu0 %v443
    %669 = vmatpush1.msra.mxu0 %v442
    %670 = vmatprep.subr.mxu0 %v447
    %671 = vmatpush1.msra.mxu0 %v446
    %672 = vmatprep.subr.mxu0 %v451
    %673 = vmatpush1.msra.mxu0 %v450
    %674 = vmatprep.subr.mxu0 %v455
    %675 = vmatpush1.msra.mxu0 %v454
    %676 = vmatprep.subr.mxu0 %v459
    %677 = vmatpush1.msra.mxu0 %v458
    %678 = vmatprep.subr.mxu0 %v463
    %679 = vmatpush1.msra.mxu0 %v462
    %680 = vmatprep.mubr.f32.mxu0 %v331
    %681 = vmatmul.mubr.f32.gmra.mrb[0].mxu0 %v330
    %v682 = vpop.f32.mrb[0].mxu0
    %v683 = vadd.f32 %v599, %v682
    %v684 = vpop.f32.mrb[0].mxu0
    %v685 = vadd.f32 %v603, %v684
    %686 = vmatprep.mubr.f32.mxu0 %v335
    %687 = vmatmul.mubr.f32.gmra.mrb[0].mxu0 %v334
    %v688 = vpop.f32.mrb[0].mxu0
    %v689 = vadd.f32 %v599, %v688
    %v690 = vpop.f32.mrb[0].mxu0
    %v691 = vadd.f32 %v603, %v690
    %692 = vdwg.mxu0
    %693 = vmatprep.subr.mxu0 %v467
    %694 = vmatpush1.msra.mxu0 %v466
    %695 = vmatprep.subr.mxu0 %v471
    %696 = vmatpush1.msra.mxu0 %v470
    %697 = vmatprep.subr.mxu0 %v475
    %698 = vmatpush1.msra.mxu0 %v474
    %699 = vmatprep.subr.mxu0 %v479
    %700 = vmatpush1.msra.mxu0 %v478
    %701 = vmatprep.subr.mxu0 %v483
    %702 = vmatpush1.msra.mxu0 %v482
    %703 = vmatprep.subr.mxu0 %v487
    %704 = vmatpush1.msra.mxu0 %v486
    %705 = vmatprep.subr.mxu0 %v491
    %706 = vmatpush1.msra.mxu0 %v490
    %707 = vmatprep.subr.mxu0 %v495
    %708 = vmatpush1.msra.mxu0 %v494
    %709 = vmatprep.subr.mxu0 %v499
    %710 = vmatpush1.msra.mxu0 %v498
    %711 = vmatprep.subr.mxu0 %v503
    %712 = vmatpush1.msra.mxu0 %v502
    %713 = vmatprep.subr.mxu0 %v507
    %714 = vmatpush1.msra.mxu0 %v506
    %715 = vmatprep.subr.mxu0 %v511
    %716 = vmatpush1.msra.mxu0 %v510
    %717 = vmatprep.subr.mxu0 %v515
    %718 = vmatpush1.msra.mxu0 %v514
    %719 = vmatprep.subr.mxu0 %v519
    %720 = vmatpush1.msra.mxu0 %v518
    %721 = vmatprep.subr.mxu0 %v523
    %722 = vmatpush1.msra.mxu0 %v522
    %723 = vmatprep.subr.mxu0 %v527
    %724 = vmatpush1.msra.mxu0 %v526
    %725 = vmatprep.subr.mxu0 %v531
    %726 = vmatpush1.msra.mxu0 %v530
    %727 = vmatprep.subr.mxu0 %v535
    %728 = vmatpush1.msra.mxu0 %v534
    %729 = vmatprep.subr.mxu0 %v539
    %730 = vmatpush1.msra.mxu0 %v538
    %731 = vmatprep.subr.mxu0 %v543
    %732 = vmatpush1.msra.mxu0 %v542
    %733 = vmatprep.subr.mxu0 %v547
    %734 = vmatpush1.msra.mxu0 %v546
    %735 = vmatprep.subr.mxu0 %v551
    %736 = vmatpush1.msra.mxu0 %v550
    %737 = vmatprep.subr.mxu0 %v555
    %738 = vmatpush1.msra.mxu0 %v554
    %739 = vmatprep.subr.mxu0 %v559
    %740 = vmatpush1.msra.mxu0 %v558
    %741 = vmatprep.subr.mxu0 %v563
    %742 = vmatpush1.msra.mxu0 %v562
    %743 = vmatprep.subr.mxu0 %v567
    %744 = vmatpush1.msra.mxu0 %v566
    %745 = vmatprep.subr.mxu0 %v571
    %746 = vmatpush1.msra.mxu0 %v570
    %747 = vmatprep.subr.mxu0 %v575
    %748 = vmatpush1.msra.mxu0 %v574
    %749 = vmatprep.subr.mxu0 %v579
    %750 = vmatpush1.msra.mxu0 %v578
    %751 = vmatprep.subr.mxu0 %v583
    %752 = vmatpush1.msra.mxu0 %v582
    %753 = vmatprep.subr.mxu0 %v587
    %754 = vmatpush1.msra.mxu0 %v586
    %755 = vmatprep.subr.mxu0 %v591
    %756 = vmatpush1.msra.mxu0 %v590
    %757 = vmatprep.mubr.f32.mxu0 %v333
    %758 = vmatmul.mubr.f32.gmra.mrb[0].mxu0 %v332
    %v759 = vpop.f32.mrb[0].mxu0
    %v760 = vadd.f32 %v683, %v759
    %v761 = vpop.f32.mrb[0].mxu0
    %v762 = vadd.f32 %v685, %v761
    %763 = vmatprep.mubr.f32.mxu0 %v337
    %764 = vmatmul.mubr.f32.gmra.mrb[0].mxu0 %v336
    %v765 = vpop.f32.mrb[0].mxu0
    %v766 = vadd.f32 %v689, %v765
    %v767 = vpop.f32.mrb[0].mxu0
    %v768 = vadd.f32 %v691, %v767
    %769 = vdwg.mxu0
    %770 = vmatprep.subr.mxu0 %v341
    %771 = vmatpush1.msra.mxu0 %v340
    %772 = vmatprep.subr.mxu0 %v345
    %773 = vmatpush1.msra.mxu0 %v344
    %774 = vmatprep.subr.mxu0 %v349
    %775 = vmatpush1.msra.mxu0 %v348
    %776 = vmatprep.subr.mxu0 %v353
    %777 = vmatpush1.msra.mxu0 %v352
    %778 = vmatprep.subr.mxu0 %v357
    %779 = vmatpush1.msra.mxu0 %v356
    %780 = vmatprep.subr.mxu0 %v361
    %781 = vmatpush1.msra.mxu0 %v360
    %782 = vmatprep.subr.mxu0 %v365
    %783 = vmatpush1.msra.mxu0 %v364
    %784 = vmatprep.subr.mxu0 %v369
    %785 = vmatpush1.msra.mxu0 %v368
    %786 = vmatprep.subr.mxu0 %v373
    %787 = vmatpush1.msra.mxu0 %v372
    %788 = vmatprep.subr.mxu0 %v377
    %789 = vmatpush1.msra.mxu0 %v376
    %790 = vmatprep.subr.mxu0 %v381
    %791 = vmatpush1.msra.mxu0 %v380
    %792 = vmatprep.subr.mxu0 %v385
    %793 = vmatpush1.msra.mxu0 %v384
    %794 = vmatprep.subr.mxu0 %v389
    %795 = vmatpush1.msra.mxu0 %v388
    %796 = vmatprep.subr.mxu0 %v393
    %797 = vmatpush1.msra.mxu0 %v392
    %798 = vmatprep.subr.mxu0 %v397
    %799 = vmatpush1.msra.mxu0 %v396
    %800 = vmatprep.subr.mxu0 %v401
    %801 = vmatpush1.msra.mxu0 %v400
    %802 = vmatprep.subr.mxu0 %v405
    %803 = vmatpush1.msra.mxu0 %v404
    %804 = vmatprep.subr.mxu0 %v409
    %805 = vmatpush1.msra.mxu0 %v408
    %806 = vmatprep.subr.mxu0 %v413
    %807 = vmatpush1.msra.mxu0 %v412
    %808 = vmatprep.subr.mxu0 %v417
    %809 = vmatpush1.msra.mxu0 %v416
    %810 = vmatprep.subr.mxu0 %v421
    %811 = vmatpush1.msra.mxu0 %v420
    %812 = vmatprep.subr.mxu0 %v425
    %813 = vmatpush1.msra.mxu0 %v424
    %814 = vmatprep.subr.mxu0 %v429
    %815 = vmatpush1.msra.mxu0 %v428
    %816 = vmatprep.subr.mxu0 %v433
    %817 = vmatpush1.msra.mxu0 %v432
    %818 = vmatprep.subr.mxu0 %v437
    %819 = vmatpush1.msra.mxu0 %v436
    %820 = vmatprep.subr.mxu0 %v441
    %821 = vmatpush1.msra.mxu0 %v440
    %822 = vmatprep.subr.mxu0 %v445
    %823 = vmatpush1.msra.mxu0 %v444
    %824 = vmatprep.subr.mxu0 %v449
    %825 = vmatpush1.msra.mxu0 %v448
    %826 = vmatprep.subr.mxu0 %v453
    %827 = vmatpush1.msra.mxu0 %v452
    %828 = vmatprep.subr.mxu0 %v457
    %829 = vmatpush1.msra.mxu0 %v456
    %830 = vmatprep.subr.mxu0 %v461
    %831 = vmatpush1.msra.mxu0 %v460
    %832 = vmatprep.subr.mxu0 %v465
    %833 = vmatpush1.msra.mxu0 %v464
    %834 = vmatprep.mubr.f32.mxu0 %v331
    %835 = vmatmul.mubr.f32.gmra.mrb[0].mxu0 %v330
    %v836 = vpop.f32.mrb[0].mxu0
    %v837 = vadd.f32 %v607, %v836
    %v838 = vpop.f32.mrb[0].mxu0
    %v839 = vadd.f32 %v611, %v838
    %840 = vmatprep.mubr.f32.mxu0 %v335
    %841 = vmatmul.mubr.f32.gmra.mrb[0].mxu0 %v334
    %v842 = vpop.f32.mrb[0].mxu0
    %v843 = vadd.f32 %v607, %v842
    %v844 = vpop.f32.mrb[0].mxu0
    %v845 = vadd.f32 %v611, %v844
    %846 = vdwg.mxu0
    %847 = vmatprep.subr.mxu0 %v469
    %848 = vmatpush1.msra.mxu0 %v468
    %849 = vmatprep.subr.mxu0 %v473
    %850 = vmatpush1.msra.mxu0 %v472
    %851 = vmatprep.subr.mxu0 %v477
    %852 = vmatpush1.msra.mxu0 %v476
    %853 = vmatprep.subr.mxu0 %v481
    %854 = vmatpush1.msra.mxu0 %v480
    %855 = vmatprep.subr.mxu0 %v485
    %856 = vmatpush1.msra.mxu0 %v484
    %857 = vmatprep.subr.mxu0 %v489
    %858 = vmatpush1.msra.mxu0 %v488
    %859 = vmatprep.subr.mxu0 %v493
    %860 = vmatpush1.msra.mxu0 %v492
    %861 = vmatprep.subr.mxu0 %v497
    %862 = vmatpush1.msra.mxu0 %v496
    %863 = vmatprep.subr.mxu0 %v501
    %864 = vmatpush1.msra.mxu0 %v500
    %865 = vmatprep.subr.mxu0 %v505
    %866 = vmatpush1.msra.mxu0 %v504
    %867 = vmatprep.subr.mxu0 %v509
    %868 = vmatpush1.msra.mxu0 %v508
    %869 = vmatprep.subr.mxu0 %v513
    %870 = vmatpush1.msra.mxu0 %v512
    %871 = vmatprep.subr.mxu0 %v517
    %872 = vmatpush1.msra.mxu0 %v516
    %873 = vmatprep.subr.mxu0 %v521
    %874 = vmatpush1.msra.mxu0 %v520
    %875 = vmatprep.subr.mxu0 %v525
    %876 = vmatpush1.msra.mxu0 %v524
    %877 = vmatprep.subr.mxu0 %v529
    %878 = vmatpush1.msra.mxu0 %v528
    %879 = vmatprep.subr.mxu0 %v533
    %880 = vmatpush1.msra.mxu0 %v532
    %881 = vmatprep.subr.mxu0 %v537
    %882 = vmatpush1.msra.mxu0 %v536
    %883 = vmatprep.subr.mxu0 %v541
    %884 = vmatpush1.msra.mxu0 %v540
    %885 = vmatprep.subr.mxu0 %v545
    %886 = vmatpush1.msra.mxu0 %v544
    %887 = vmatprep.subr.mxu0 %v549
    %888 = vmatpush1.msra.mxu0 %v548
    %889 = vmatprep.subr.mxu0 %v553
    %890 = vmatpush1.msra.mxu0 %v552
    %891 = vmatprep.subr.mxu0 %v557
    %892 = vmatpush1.msra.mxu0 %v556
    %893 = vmatprep.subr.mxu0 %v561
    %894 = vmatpush1.msra.mxu0 %v560
    %895 = vmatprep.subr.mxu0 %v565
    %896 = vmatpush1.msra.mxu0 %v564
    %897 = vmatprep.subr.mxu0 %v569
    %898 = vmatpush1.msra.mxu0 %v568
    %899 = vmatprep.subr.mxu0 %v573
    %900 = vmatpush1.msra.mxu0 %v572
    %901 = vmatprep.subr.mxu0 %v577
    %902 = vmatpush1.msra.mxu0 %v576
    %903 = vmatprep.subr.mxu0 %v581
    %904 = vmatpush1.msra.mxu0 %v580
    %905 = vmatprep.subr.mxu0 %v585
    %906 = vmatpush1.msra.mxu0 %v584
    %907 = vmatprep.subr.mxu0 %v589
    %908 = vmatpush1.msra.mxu0 %v588
    %909 = vmatprep.subr.mxu0 %v593
    %910 = vmatpush1.msra.mxu0 %v592
    %911 = vmatprep.mubr.f32.mxu0 %v333
    %912 = vmatmul.mubr.f32.gmra.mrb[0].mxu0 %v332
    %v913 = vpop.f32.mrb[0].mxu0
    %v914 = vadd.f32 %v837, %v913
    %v915 = vpop.f32.mrb[0].mxu0
    %v916 = vadd.f32 %v839, %v915
    %917 = vmatprep.mubr.f32.mxu0 %v337
    %918 = vmatmul.mubr.f32.gmra.mrb[0].mxu0 %v336
    %v919 = vpop.f32.mrb[0].mxu0
    %v920 = vadd.f32 %v843, %v919
    %v921 = vpop.f32.mrb[0].mxu0
    %v922 = vadd.f32 %v845, %v921
    %923 = vdwg.mxu0
    %v924 = vmax.f32 %v760, 0.0
    %v925 = vmax.f32 %v762, 0.0
    %v926 = vmax.f32 %v914, 0.0
    %v927 = vmax.f32 %v916, 0.0
    %v928 = vmax.f32 %v766, 0.0
    %v929 = vmax.f32 %v768, 0.0
    %v930 = vmax.f32 %v920, 0.0
    %v931 = vmax.f32 %v922, 0.0
    %v932 = vld [vmem:[#allocation7] sm:$0xff]
    %v933 = vld [vmem:[#allocation7 + $0x8] sm:$0xff]
    %v934 = vld [vmem:[#allocation7 + $0x10] sm:$0xff]
    %v935 = vld [vmem:[#allocation7 + $0x18] sm:$0xff]
    %v936 = vld [vmem:[#allocation7 + $0x20] sm:$0xff]
    %v937 = vld [vmem:[#allocation7 + $0x28] sm:$0xff]
    %v938 = vld [vmem:[#allocation7 + $0x30] sm:$0xff]
    %v939 = vld [vmem:[#allocation7 + $0x38] sm:$0xff]
    %v940 = vld [vmem:[#allocation7 + $0x40] sm:$0xff]
    %v941 = vld [vmem:[#allocation7 + $0x48] sm:$0xff]
    %v942 = vld [vmem:[#allocation7 + $0x50] sm:$0xff]
    %v943 = vld [vmem:[#allocation7 + $0x58] sm:$0xff]
    %v944 = vld [vmem:[#allocation7 + $0x60] sm:$0xff]
    %v945 = vld [vmem:[#allocation7 + $0x68] sm:$0xff]
    %v946 = vld [vmem:[#allocation7 + $0x70] sm:$0xff]
    %v947 = vld [vmem:[#allocation7 + $0x78] sm:$0xff]
    %v948 = vld [vmem:[#allocation7 + $0x80] sm:$0xff]
    %v949 = vld [vmem:[#allocation7 + $0x88] sm:$0xff]
    %v950 = vld [vmem:[#allocation7 + $0x90] sm:$0xff]
    %v951 = vld [vmem:[#allocation7 + $0x98] sm:$0xff]
    %v952 = vld [vmem:[#allocation7 + $0xa0] sm:$0xff]
    %v953 = vld [vmem:[#allocation7 + $0xa8] sm:$0xff]
    %v954 = vld [vmem:[#allocation7 + $0xb0] sm:$0xff]
    %v955 = vld [vmem:[#allocation7 + $0xb8] sm:$0xff]
    %v956 = vld [vmem:[#allocation7 + $0xc0] sm:$0xff]
    %v957 = vld [vmem:[#allocation7 + $0xc8] sm:$0xff]
    %v958 = vld [vmem:[#allocation7 + $0xd0] sm:$0xff]
    %v959 = vld [vmem:[#allocation7 + $0xd8] sm:$0xff]
    %v960 = vld [vmem:[#allocation7 + $0xe0] sm:$0xff]
    %v961 = vld [vmem:[#allocation7 + $0xe8] sm:$0xff]
    %v962 = vld [vmem:[#allocation7 + $0xf0] sm:$0xff]
    %v963 = vld [vmem:[#allocation7 + $0xf8] sm:$0xff]
    %v964 = vld [vmem:[#allocation7 + $0x100] sm:$0xff]
    %v965 = vld [vmem:[#allocation7 + $0x108] sm:$0xff]
    %v966 = vld [vmem:[#allocation7 + $0x110] sm:$0xff]
    %v967 = vld [vmem:[#allocation7 + $0x118] sm:$0xff]
    %v968 = vld [vmem:[#allocation7 + $0x120] sm:$0xff]
    %v969 = vld [vmem:[#allocation7 + $0x128] sm:$0xff]
    %v970 = vld [vmem:[#allocation7 + $0x130] sm:$0xff]
    %v971 = vld [vmem:[#allocation7 + $0x138] sm:$0xff]
    %v972 = vld [vmem:[#allocation7 + $0x140] sm:$0xff]
    %v973 = vld [vmem:[#allocation7 + $0x148] sm:$0xff]
    %v974 = vld [vmem:[#allocation7 + $0x150] sm:$0xff]
    %v975 = vld [vmem:[#allocation7 + $0x158] sm:$0xff]
    %v976 = vld [vmem:[#allocation7 + $0x160] sm:$0xff]
    %v977 = vld [vmem:[#allocation7 + $0x168] sm:$0xff]
    %v978 = vld [vmem:[#allocation7 + $0x170] sm:$0xff]
    %v979 = vld [vmem:[#allocation7 + $0x178] sm:$0xff]
    %v980 = vld [vmem:[#allocation7 + $0x180] sm:$0xff]
    %v981 = vld [vmem:[#allocation7 + $0x188] sm:$0xff]
    %v982 = vld [vmem:[#allocation7 + $0x190] sm:$0xff]
    %v983 = vld [vmem:[#allocation7 + $0x198] sm:$0xff]
    %v984 = vld [vmem:[#allocation7 + $0x1a0] sm:$0xff]
    %v985 = vld [vmem:[#allocation7 + $0x1a8] sm:$0xff]
    %v986 = vld [vmem:[#allocation7 + $0x1b0] sm:$0xff]
    %v987 = vld [vmem:[#allocation7 + $0x1b8] sm:$0xff]
    %v988 = vld [vmem:[#allocation7 + $0x1c0] sm:$0xff]
    %v989 = vld [vmem:[#allocation7 + $0x1c8] sm:$0xff]
    %v990 = vld [vmem:[#allocation7 + $0x1d0] sm:$0xff]
    %v991 = vld [vmem:[#allocation7 + $0x1d8] sm:$0xff]
    %v992 = vld [vmem:[#allocation7 + $0x1e0] sm:$0xff]
    %v993 = vld [vmem:[#allocation7 + $0x1e8] sm:$0xff]
    %v994 = vld [vmem:[#allocation7 + $0x1f0] sm:$0xff]
    %v995 = vld [vmem:[#allocation7 + $0x1f8] sm:$0xff]
    %v996 = vld [vmem:[#allocation7 + $0x200] sm:$0xff]
    %v997 = vld [vmem:[#allocation7 + $0x208] sm:$0xff]
    %v998 = vld [vmem:[#allocation7 + $0x210] sm:$0xff]
    %v999 = vld [vmem:[#allocation7 + $0x218] sm:$0xff]
    %v1000 = vld [vmem:[#allocation7 + $0x220] sm:$0xff]
    %v1001 = vld [vmem:[#allocation7 + $0x228] sm:$0xff]
    %v1002 = vld [vmem:[#allocation7 + $0x230] sm:$0xff]
    %v1003 = vld [vmem:[#allocation7 + $0x238] sm:$0xff]
    %v1004 = vld [vmem:[#allocation7 + $0x240] sm:$0xff]
    %v1005 = vld [vmem:[#allocation7 + $0x248] sm:$0xff]
    %v1006 = vld [vmem:[#allocation7 + $0x250] sm:$0xff]
    %v1007 = vld [vmem:[#allocation7 + $0x258] sm:$0xff]
    %v1008 = vld [vmem:[#allocation7 + $0x260] sm:$0xff]
    %v1009 = vld [vmem:[#allocation7 + $0x268] sm:$0xff]
    %v1010 = vld [vmem:[#allocation7 + $0x270] sm:$0xff]
    %v1011 = vld [vmem:[#allocation7 + $0x278] sm:$0xff]
    %v1012 = vld [vmem:[#allocation7 + $0x280] sm:$0xff]
    %v1013 = vld [vmem:[#allocation7 + $0x288] sm:$0xff]
    %v1014 = vld [vmem:[#allocation7 + $0x290] sm:$0xff]
    %v1015 = vld [vmem:[#allocation7 + $0x298] sm:$0xff]
    %v1016 = vld [vmem:[#allocation7 + $0x2a0] sm:$0xff]
    %v1017 = vld [vmem:[#allocation7 + $0x2a8] sm:$0xff]
    %v1018 = vld [vmem:[#allocation7 + $0x2b0] sm:$0xff]
    %v1019 = vld [vmem:[#allocation7 + $0x2b8] sm:$0xff]
    %v1020 = vld [vmem:[#allocation7 + $0x2c0] sm:$0xff]
    %v1021 = vld [vmem:[#allocation7 + $0x2c8] sm:$0xff]
    %v1022 = vld [vmem:[#allocation7 + $0x2d0] sm:$0xff]
    %v1023 = vld [vmem:[#allocation7 + $0x2d8] sm:$0xff]
    %v1024 = vld [vmem:[#allocation7 + $0x2e0] sm:$0xff]
    %v1025 = vld [vmem:[#allocation7 + $0x2e8] sm:$0xff]
    %v1026 = vld [vmem:[#allocation7 + $0x2f0] sm:$0xff]
    %v1027 = vld [vmem:[#allocation7 + $0x2f8] sm:$0xff]
    %v1028 = vld [vmem:[#allocation7 + $0x300] sm:$0xff]
    %v1029 = vld [vmem:[#allocation7 + $0x308] sm:$0xff]
    %v1030 = vld [vmem:[#allocation7 + $0x310] sm:$0xff]
    %v1031 = vld [vmem:[#allocation7 + $0x318] sm:$0xff]
    %v1032 = vld [vmem:[#allocation7 + $0x320] sm:$0xff]
    %v1033 = vld [vmem:[#allocation7 + $0x328] sm:$0xff]
    %v1034 = vld [vmem:[#allocation7 + $0x330] sm:$0xff]
    %v1035 = vld [vmem:[#allocation7 + $0x338] sm:$0xff]
    %v1036 = vld [vmem:[#allocation7 + $0x340] sm:$0xff]
    %v1037 = vld [vmem:[#allocation7 + $0x348] sm:$0xff]
    %v1038 = vld [vmem:[#allocation7 + $0x350] sm:$0xff]
    %v1039 = vld [vmem:[#allocation7 + $0x358] sm:$0xff]
    %v1040 = vld [vmem:[#allocation7 + $0x360] sm:$0xff]
    %v1041 = vld [vmem:[#allocation7 + $0x368] sm:$0xff]
    %v1042 = vld [vmem:[#allocation7 + $0x370] sm:$0xff]
    %v1043 = vld [vmem:[#allocation7 + $0x378] sm:$0xff]
    %v1044 = vld [vmem:[#allocation7 + $0x380] sm:$0xff]
    %v1045 = vld [vmem:[#allocation7 + $0x388] sm:$0xff]
    %v1046 = vld [vmem:[#allocation7 + $0x390] sm:$0xff]
    %v1047 = vld [vmem:[#allocation7 + $0x398] sm:$0xff]
    %v1048 = vld [vmem:[#allocation7 + $0x3a0] sm:$0xff]
    %v1049 = vld [vmem:[#allocation7 + $0x3a8] sm:$0xff]
    %v1050 = vld [vmem:[#allocation7 + $0x3b0] sm:$0xff]
    %v1051 = vld [vmem:[#allocation7 + $0x3b8] sm:$0xff]
    %v1052 = vld [vmem:[#allocation7 + $0x3c0] sm:$0xff]
    %v1053 = vld [vmem:[#allocation7 + $0x3c8] sm:$0xff]
    %v1054 = vld [vmem:[#allocation7 + $0x3d0] sm:$0xff]
    %v1055 = vld [vmem:[#allocation7 + $0x3d8] sm:$0xff]
    %v1056 = vld [vmem:[#allocation7 + $0x3e0] sm:$0xff]
    %v1057 = vld [vmem:[#allocation7 + $0x3e8] sm:$0xff]
    %v1058 = vld [vmem:[#allocation7 + $0x3f0] sm:$0xff]
    %v1059 = vld [vmem:[#allocation7 + $0x3f8] sm:$0xff]
    %v1060 = vld [vmem:[#allocation7 + $0x400] sm:$0xff]
    %v1061 = vld [vmem:[#allocation7 + $0x408] sm:$0xff]
    %v1062 = vld [vmem:[#allocation7 + $0x410] sm:$0xff]
    %v1063 = vld [vmem:[#allocation7 + $0x418] sm:$0xff]
    %v1064 = vld [vmem:[#allocation7 + $0x420] sm:$0xff]
    %v1065 = vld [vmem:[#allocation7 + $0x428] sm:$0xff]
    %v1066 = vld [vmem:[#allocation7 + $0x430] sm:$0xff]
    %v1067 = vld [vmem:[#allocation7 + $0x438] sm:$0xff]
    %v1068 = vld [vmem:[#allocation7 + $0x440] sm:$0xff]
    %v1069 = vld [vmem:[#allocation7 + $0x448] sm:$0xff]
    %v1070 = vld [vmem:[#allocation7 + $0x450] sm:$0xff]
    %v1071 = vld [vmem:[#allocation7 + $0x458] sm:$0xff]
    %v1072 = vld [vmem:[#allocation7 + $0x460] sm:$0xff]
    %v1073 = vld [vmem:[#allocation7 + $0x468] sm:$0xff]
    %v1074 = vld [vmem:[#allocation7 + $0x470] sm:$0xff]
    %v1075 = vld [vmem:[#allocation7 + $0x478] sm:$0xff]
    %v1076 = vld [vmem:[#allocation7 + $0x480] sm:$0xff]
    %v1077 = vld [vmem:[#allocation7 + $0x488] sm:$0xff]
    %v1078 = vld [vmem:[#allocation7 + $0x490] sm:$0xff]
    %v1079 = vld [vmem:[#allocation7 + $0x498] sm:$0xff]
    %v1080 = vld [vmem:[#allocation7 + $0x4a0] sm:$0xff]
    %v1081 = vld [vmem:[#allocation7 + $0x4a8] sm:$0xff]
    %v1082 = vld [vmem:[#allocation7 + $0x4b0] sm:$0xff]
    %v1083 = vld [vmem:[#allocation7 + $0x4b8] sm:$0xff]
    %v1084 = vld [vmem:[#allocation7 + $0x4c0] sm:$0xff]
    %v1085 = vld [vmem:[#allocation7 + $0x4c8] sm:$0xff]
    %v1086 = vld [vmem:[#allocation7 + $0x4d0] sm:$0xff]
    %v1087 = vld [vmem:[#allocation7 + $0x4d8] sm:$0xff]
    %v1088 = vld [vmem:[#allocation7 + $0x4e0] sm:$0xff]
    %v1089 = vld [vmem:[#allocation7 + $0x4e8] sm:$0xff]
    %v1090 = vld [vmem:[#allocation7 + $0x4f0] sm:$0xff]
    %v1091 = vld [vmem:[#allocation7 + $0x4f8] sm:$0xff]
    %v1092 = vld [vmem:[#allocation7 + $0x500] sm:$0xff]
    %v1093 = vld [vmem:[#allocation7 + $0x508] sm:$0xff]
    %v1094 = vld [vmem:[#allocation7 + $0x510] sm:$0xff]
    %v1095 = vld [vmem:[#allocation7 + $0x518] sm:$0xff]
    %v1096 = vld [vmem:[#allocation7 + $0x520] sm:$0xff]
    %v1097 = vld [vmem:[#allocation7 + $0x528] sm:$0xff]
    %v1098 = vld [vmem:[#allocation7 + $0x530] sm:$0xff]
    %v1099 = vld [vmem:[#allocation7 + $0x538] sm:$0xff]
    %v1100 = vld [vmem:[#allocation7 + $0x540] sm:$0xff]
    %v1101 = vld [vmem:[#allocation7 + $0x548] sm:$0xff]
    %v1102 = vld [vmem:[#allocation7 + $0x550] sm:$0xff]
    %v1103 = vld [vmem:[#allocation7 + $0x558] sm:$0xff]
    %v1104 = vld [vmem:[#allocation7 + $0x560] sm:$0xff]
    %v1105 = vld [vmem:[#allocation7 + $0x568] sm:$0xff]
    %v1106 = vld [vmem:[#allocation7 + $0x570] sm:$0xff]
    %v1107 = vld [vmem:[#allocation7 + $0x578] sm:$0xff]
    %v1108 = vld [vmem:[#allocation7 + $0x580] sm:$0xff]
    %v1109 = vld [vmem:[#allocation7 + $0x588] sm:$0xff]
    %v1110 = vld [vmem:[#allocation7 + $0x590] sm:$0xff]
    %v1111 = vld [vmem:[#allocation7 + $0x598] sm:$0xff]
    %v1112 = vld [vmem:[#allocation7 + $0x5a0] sm:$0xff]
    %v1113 = vld [vmem:[#allocation7 + $0x5a8] sm:$0xff]
    %v1114 = vld [vmem:[#allocation7 + $0x5b0] sm:$0xff]
    %v1115 = vld [vmem:[#allocation7 + $0x5b8] sm:$0xff]
    %v1116 = vld [vmem:[#allocation7 + $0x5c0] sm:$0xff]
    %v1117 = vld [vmem:[#allocation7 + $0x5c8] sm:$0xff]
    %v1118 = vld [vmem:[#allocation7 + $0x5d0] sm:$0xff]
    %v1119 = vld [vmem:[#allocation7 + $0x5d8] sm:$0xff]
    %v1120 = vld [vmem:[#allocation7 + $0x5e0] sm:$0xff]
    %v1121 = vld [vmem:[#allocation7 + $0x5e8] sm:$0xff]
    %v1122 = vld [vmem:[#allocation7 + $0x5f0] sm:$0xff]
    %v1123 = vld [vmem:[#allocation7 + $0x5f8] sm:$0xff]
    %v1124 = vld [vmem:[#allocation7 + $0x600] sm:$0xff]
    %v1125 = vld [vmem:[#allocation7 + $0x608] sm:$0xff]
    %v1126 = vld [vmem:[#allocation7 + $0x610] sm:$0xff]
    %v1127 = vld [vmem:[#allocation7 + $0x618] sm:$0xff]
    %v1128 = vld [vmem:[#allocation7 + $0x620] sm:$0xff]
    %v1129 = vld [vmem:[#allocation7 + $0x628] sm:$0xff]
    %v1130 = vld [vmem:[#allocation7 + $0x630] sm:$0xff]
    %v1131 = vld [vmem:[#allocation7 + $0x638] sm:$0xff]
    %v1132 = vld [vmem:[#allocation7 + $0x640] sm:$0xff]
    %v1133 = vld [vmem:[#allocation7 + $0x648] sm:$0xff]
    %v1134 = vld [vmem:[#allocation7 + $0x650] sm:$0xff]
    %v1135 = vld [vmem:[#allocation7 + $0x658] sm:$0xff]
    %v1136 = vld [vmem:[#allocation7 + $0x660] sm:$0xff]
    %v1137 = vld [vmem:[#allocation7 + $0x668] sm:$0xff]
    %v1138 = vld [vmem:[#allocation7 + $0x670] sm:$0xff]
    %v1139 = vld [vmem:[#allocation7 + $0x678] sm:$0xff]
    %v1140 = vld [vmem:[#allocation7 + $0x680] sm:$0xff]
    %v1141 = vld [vmem:[#allocation7 + $0x688] sm:$0xff]
    %v1142 = vld [vmem:[#allocation7 + $0x690] sm:$0xff]
    %v1143 = vld [vmem:[#allocation7 + $0x698] sm:$0xff]
    %v1144 = vld [vmem:[#allocation7 + $0x6a0] sm:$0xff]
    %v1145 = vld [vmem:[#allocation7 + $0x6a8] sm:$0xff]
    %v1146 = vld [vmem:[#allocation7 + $0x6b0] sm:$0xff]
    %v1147 = vld [vmem:[#allocation7 + $0x6b8] sm:$0xff]
    %v1148 = vld [vmem:[#allocation7 + $0x6c0] sm:$0xff]
    %v1149 = vld [vmem:[#allocation7 + $0x6c8] sm:$0xff]
    %v1150 = vld [vmem:[#allocation7 + $0x6d0] sm:$0xff]
    %v1151 = vld [vmem:[#allocation7 + $0x6d8] sm:$0xff]
    %v1152 = vld [vmem:[#allocation7 + $0x6e0] sm:$0xff]
    %v1153 = vld [vmem:[#allocation7 + $0x6e8] sm:$0xff]
    %v1154 = vld [vmem:[#allocation7 + $0x6f0] sm:$0xff]
    %v1155 = vld [vmem:[#allocation7 + $0x6f8] sm:$0xff]
    %v1156 = vld [vmem:[#allocation7 + $0x700] sm:$0xff]
    %v1157 = vld [vmem:[#allocation7 + $0x708] sm:$0xff]
    %v1158 = vld [vmem:[#allocation7 + $0x710] sm:$0xff]
    %v1159 = vld [vmem:[#allocation7 + $0x718] sm:$0xff]
    %v1160 = vld [vmem:[#allocation7 + $0x720] sm:$0xff]
    %v1161 = vld [vmem:[#allocation7 + $0x728] sm:$0xff]
    %v1162 = vld [vmem:[#allocation7 + $0x730] sm:$0xff]
    %v1163 = vld [vmem:[#allocation7 + $0x738] sm:$0xff]
    %v1164 = vld [vmem:[#allocation7 + $0x740] sm:$0xff]
    %v1165 = vld [vmem:[#allocation7 + $0x748] sm:$0xff]
    %v1166 = vld [vmem:[#allocation7 + $0x750] sm:$0xff]
    %v1167 = vld [vmem:[#allocation7 + $0x758] sm:$0xff]
    %v1168 = vld [vmem:[#allocation7 + $0x760] sm:$0xff]
    %v1169 = vld [vmem:[#allocation7 + $0x768] sm:$0xff]
    %v1170 = vld [vmem:[#allocation7 + $0x770] sm:$0xff]
    %v1171 = vld [vmem:[#allocation7 + $0x778] sm:$0xff]
    %v1172 = vld [vmem:[#allocation7 + $0x780] sm:$0xff]
    %v1173 = vld [vmem:[#allocation7 + $0x788] sm:$0xff]
    %v1174 = vld [vmem:[#allocation7 + $0x790] sm:$0xff]
    %v1175 = vld [vmem:[#allocation7 + $0x798] sm:$0xff]
    %v1176 = vld [vmem:[#allocation7 + $0x7a0] sm:$0xff]
    %v1177 = vld [vmem:[#allocation7 + $0x7a8] sm:$0xff]
    %v1178 = vld [vmem:[#allocation7 + $0x7b0] sm:$0xff]
    %v1179 = vld [vmem:[#allocation7 + $0x7b8] sm:$0xff]
    %v1180 = vld [vmem:[#allocation7 + $0x7c0] sm:$0xff]
    %v1181 = vld [vmem:[#allocation7 + $0x7c8] sm:$0xff]
    %v1182 = vld [vmem:[#allocation7 + $0x7d0] sm:$0xff]
    %v1183 = vld [vmem:[#allocation7 + $0x7d8] sm:$0xff]
    %v1184 = vld [vmem:[#allocation7 + $0x7e0] sm:$0xff]
    %v1185 = vld [vmem:[#allocation7 + $0x7e8] sm:$0xff]
    %v1186 = vld [vmem:[#allocation7 + $0x7f0] sm:$0xff]
    %v1187 = vld [vmem:[#allocation7 + $0x7f8] sm:$0xff]
    %v1188 = vld [vmem:[%s6] sm:$0xf]
    %v1190 = vlaneseq
    %v1191 = vshrl.u32 %v1190, 7
    %v1192 = vsub.s32 0, %v1191
    %v1193 = vrot.slane %v1188, %v1192
    %v1194 = vlaneseq
    %v1195 = vshrl.u32 %v1194, 7
    %v1196 = vsub.s32 1, %v1195
    %v1197 = vrot.slane %v1188, %v1196
    %v1198 = vlaneseq
    %v1199 = vshrl.u32 %v1198, 7
    %v1200 = vsub.s32 2, %v1199
    %v1201 = vrot.slane %v1188, %v1200
    %v1202 = vlaneseq
    %v1203 = vshrl.u32 %v1202, 7
    %v1204 = vsub.s32 3, %v1203
    %v1205 = vrot.slane %v1188, %v1204
    %1210 = vmatprep.subr.mxu0 %v933
    %1211 = vmatpush1.msra.mxu0 %v932
    %1212 = vmatprep.subr.mxu0 %v937
    %1213 = vmatpush1.msra.mxu0 %v936
    %1214 = vmatprep.subr.mxu0 %v941
    %1215 = vmatpush1.msra.mxu0 %v940
    %1216 = vmatprep.subr.mxu0 %v945
    %1217 = vmatpush1.msra.mxu0 %v944
    %1218 = vmatprep.subr.mxu0 %v949
    %1219 = vmatpush1.msra.mxu0 %v948
    %1220 = vmatprep.subr.mxu0 %v953
    %1221 = vmatpush1.msra.mxu0 %v952
    %1222 = vmatprep.subr.mxu0 %v957
    %1223 = vmatpush1.msra.mxu0 %v956
    %1224 = vmatprep.subr.mxu0 %v961
    %1225 = vmatpush1.msra.mxu0 %v960
    %1226 = vmatprep.subr.mxu0 %v965
    %1227 = vmatpush1.msra.mxu0 %v964
    %1228 = vmatprep.subr.mxu0 %v969
    %1229 = vmatpush1.msra.mxu0 %v968
    %1230 = vmatprep.subr.mxu0 %v973
    %1231 = vmatpush1.msra.mxu0 %v972
    %1232 = vmatprep.subr.mxu0 %v977
    %1233 = vmatpush1.msra.mxu0 %v976
    %1234 = vmatprep.subr.mxu0 %v981
    %1235 = vmatpush1.msra.mxu0 %v980
    %1236 = vmatprep.subr.mxu0 %v985
    %1237 = vmatpush1.msra.mxu0 %v984
    %1238 = vmatprep.subr.mxu0 %v989
    %1239 = vmatpush1.msra.mxu0 %v988
    %1240 = vmatprep.subr.mxu0 %v993
    %1241 = vmatpush1.msra.mxu0 %v992
    %1242 = vmatprep.subr.mxu0 %v997
    %1243 = vmatpush1.msra.mxu0 %v996
    %1244 = vmatprep.subr.mxu0 %v1001
    %1245 = vmatpush1.msra.mxu0 %v1000
    %1246 = vmatprep.subr.mxu0 %v1005
    %1247 = vmatpush1.msra.mxu0 %v1004
    %1248 = vmatprep.subr.mxu0 %v1009
    %1249 = vmatpush1.msra.mxu0 %v1008
    %1250 = vmatprep.subr.mxu0 %v1013
    %1251 = vmatpush1.msra.mxu0 %v1012
    %1252 = vmatprep.subr.mxu0 %v1017
    %1253 = vmatpush1.msra.mxu0 %v1016
    %1254 = vmatprep.subr.mxu0 %v1021
    %1255 = vmatpush1.msra.mxu0 %v1020
    %1256 = vmatprep.subr.mxu0 %v1025
    %1257 = vmatpush1.msra.mxu0 %v1024
    %1258 = vmatprep.subr.mxu0 %v1029
    %1259 = vmatpush1.msra.mxu0 %v1028
    %1260 = vmatprep.subr.mxu0 %v1033
    %1261 = vmatpush1.msra.mxu0 %v1032
    %1262 = vmatprep.subr.mxu0 %v1037
    %1263 = vmatpush1.msra.mxu0 %v1036
    %1264 = vmatprep.subr.mxu0 %v1041
    %1265 = vmatpush1.msra.mxu0 %v1040
    %1266 = vmatprep.subr.mxu0 %v1045
    %1267 = vmatpush1.msra.mxu0 %v1044
    %1268 = vmatprep.subr.mxu0 %v1049
    %1269 = vmatpush1.msra.mxu0 %v1048
    %1270 = vmatprep.subr.mxu0 %v1053
    %1271 = vmatpush1.msra.mxu0 %v1052
    %1272 = vmatprep.subr.mxu0 %v1057
    %1273 = vmatpush1.msra.mxu0 %v1056
    %1274 = vmatprep.mubr.f32.mxu0 %v925
    %1275 = vmatmul.mubr.f32.gmra.mrb[0].mxu0 %v924
    %v1276 = vpop.f32.mrb[0].mxu0
    %v1277 = vadd.f32 %v1193, %v1276
    %v1278 = vpop.f32.mrb[0].mxu0
    %v1279 = vadd.f32 %v1197, %v1278
    %1280 = vmatprep.mubr.f32.mxu0 %v929
    %1281 = vmatmul.mubr.f32.gmra.mrb[0].mxu0 %v928
    %v1282 = vpop.f32.mrb[0].mxu0
    %v1283 = vadd.f32 %v1193, %v1282
    %v1284 = vpop.f32.mrb[0].mxu0
    %v1285 = vadd.f32 %v1197, %v1284
    %1286 = vdwg.mxu0
    %1287 = vmatprep.subr.mxu0 %v1061
    %1288 = vmatpush1.msra.mxu0 %v1060
    %1289 = vmatprep.subr.mxu0 %v1065
    %1290 = vmatpush1.msra.mxu0 %v1064
    %1291 = vmatprep.subr.mxu0 %v1069
    %1292 = vmatpush1.msra.mxu0 %v1068
    %1293 = vmatprep.subr.mxu0 %v1073
    %1294 = vmatpush1.msra.mxu0 %v1072
    %1295 = vmatprep.subr.mxu0 %v1077
    %1296 = vmatpush1.msra.mxu0 %v1076
    %1297 = vmatprep.subr.mxu0 %v1081
    %1298 = vmatpush1.msra.mxu0 %v1080
    %1299 = vmatprep.subr.mxu0 %v1085
    %1300 = vmatpush1.msra.mxu0 %v1084
    %1301 = vmatprep.subr.mxu0 %v1089
    %1302 = vmatpush1.msra.mxu0 %v1088
    %1303 = vmatprep.subr.mxu0 %v1093
    %1304 = vmatpush1.msra.mxu0 %v1092
    %1305 = vmatprep.subr.mxu0 %v1097
    %1306 = vmatpush1.msra.mxu0 %v1096
    %1307 = vmatprep.subr.mxu0 %v1101
    %1308 = vmatpush1.msra.mxu0 %v1100
    %1309 = vmatprep.subr.mxu0 %v1105
    %1310 = vmatpush1.msra.mxu0 %v1104
    %1311 = vmatprep.subr.mxu0 %v1109
    %1312 = vmatpush1.msra.mxu0 %v1108
    %1313 = vmatprep.subr.mxu0 %v1113
    %1314 = vmatpush1.msra.mxu0 %v1112
    %1315 = vmatprep.subr.mxu0 %v1117
    %1316 = vmatpush1.msra.mxu0 %v1116
    %1317 = vmatprep.subr.mxu0 %v1121
    %1318 = vmatpush1.msra.mxu0 %v1120
    %1319 = vmatprep.subr.mxu0 %v1125
    %1320 = vmatpush1.msra.mxu0 %v1124
    %1321 = vmatprep.subr.mxu0 %v1129
    %1322 = vmatpush1.msra.mxu0 %v1128
    %1323 = vmatprep.subr.mxu0 %v1133
    %1324 = vmatpush1.msra.mxu0 %v1132
    %1325 = vmatprep.subr.mxu0 %v1137
    %1326 = vmatpush1.msra.mxu0 %v1136
    %1327 = vmatprep.subr.mxu0 %v1141
    %1328 = vmatpush1.msra.mxu0 %v1140
    %1329 = vmatprep.subr.mxu0 %v1145
    %1330 = vmatpush1.msra.mxu0 %v1144
    %1331 = vmatprep.subr.mxu0 %v1149
    %1332 = vmatpush1.msra.mxu0 %v1148
    %1333 = vmatprep.subr.mxu0 %v1153
    %1334 = vmatpush1.msra.mxu0 %v1152
    %1335 = vmatprep.subr.mxu0 %v1157
    %1336 = vmatpush1.msra.mxu0 %v1156
    %1337 = vmatprep.subr.mxu0 %v1161
    %1338 = vmatpush1.msra.mxu0 %v1160
    %1339 = vmatprep.subr.mxu0 %v1165
    %1340 = vmatpush1.msra.mxu0 %v1164
    %1341 = vmatprep.subr.mxu0 %v1169
    %1342 = vmatpush1.msra.mxu0 %v1168
    %1343 = vmatprep.subr.mxu0 %v1173
    %1344 = vmatpush1.msra.mxu0 %v1172
    %1345 = vmatprep.subr.mxu0 %v1177
    %1346 = vmatpush1.msra.mxu0 %v1176
    %1347 = vmatprep.subr.mxu0 %v1181
    %1348 = vmatpush1.msra.mxu0 %v1180
    %1349 = vmatprep.subr.mxu0 %v1185
    %1350 = vmatpush1.msra.mxu0 %v1184
    %1351 = vmatprep.mubr.f32.mxu0 %v927
    %1352 = vmatmul.mubr.f32.gmra.mrb[0].mxu0 %v926
    %v1353 = vpop.f32.mrb[0].mxu0
    %v1354 = vadd.f32 %v1277, %v1353
    %v1355 = vpop.f32.mrb[0].mxu0
    %v1356 = vadd.f32 %v1279, %v1355
    %1357 = vmatprep.mubr.f32.mxu0 %v931
    %1358 = vmatmul.mubr.f32.gmra.mrb[0].mxu0 %v930
    %v1359 = vpop.f32.mrb[0].mxu0
    %v1360 = vadd.f32 %v1283, %v1359
    %v1361 = vpop.f32.mrb[0].mxu0
    %v1362 = vadd.f32 %v1285, %v1361
    %1363 = vdwg.mxu0
    %1364 = vmatprep.subr.mxu0 %v935
    %1365 = vmatpush1.msra.mxu0 %v934
    %1366 = vmatprep.subr.mxu0 %v939
    %1367 = vmatpush1.msra.mxu0 %v938
    %1368 = vmatprep.subr.mxu0 %v943
    %1369 = vmatpush1.msra.mxu0 %v942
    %1370 = vmatprep.subr.mxu0 %v947
    %1371 = vmatpush1.msra.mxu0 %v946
    %1372 = vmatprep.subr.mxu0 %v951
    %1373 = vmatpush1.msra.mxu0 %v950
    %1374 = vmatprep.subr.mxu0 %v955
    %1375 = vmatpush1.msra.mxu0 %v954
    %1376 = vmatprep.subr.mxu0 %v959
    %1377 = vmatpush1.msra.mxu0 %v958
    %1378 = vmatprep.subr.mxu0 %v963
    %1379 = vmatpush1.msra.mxu0 %v962
    %1380 = vmatprep.subr.mxu0 %v967
    %1381 = vmatpush1.msra.mxu0 %v966
    %1382 = vmatprep.subr.mxu0 %v971
    %1383 = vmatpush1.msra.mxu0 %v970
    %1384 = vmatprep.subr.mxu0 %v975
    %1385 = vmatpush1.msra.mxu0 %v974
    %1386 = vmatprep.subr.mxu0 %v979
    %1387 = vmatpush1.msra.mxu0 %v978
    %1388 = vmatprep.subr.mxu0 %v983
    %1389 = vmatpush1.msra.mxu0 %v982
    %1390 = vmatprep.subr.mxu0 %v987
    %1391 = vmatpush1.msra.mxu0 %v986
    %1392 = vmatprep.subr.mxu0 %v991
    %1393 = vmatpush1.msra.mxu0 %v990
    %1394 = vmatprep.subr.mxu0 %v995
    %1395 = vmatpush1.msra.mxu0 %v994
    %1396 = vmatprep.subr.mxu0 %v999
    %1397 = vmatpush1.msra.mxu0 %v998
    %1398 = vmatprep.subr.mxu0 %v1003
    %1399 = vmatpush1.msra.mxu0 %v1002
    %1400 = vmatprep.subr.mxu0 %v1007
    %1401 = vmatpush1.msra.mxu0 %v1006
    %1402 = vmatprep.subr.mxu0 %v1011
    %1403 = vmatpush1.msra.mxu0 %v1010
    %1404 = vmatprep.subr.mxu0 %v1015
    %1405 = vmatpush1.msra.mxu0 %v1014
    %1406 = vmatprep.subr.mxu0 %v1019
    %1407 = vmatpush1.msra.mxu0 %v1018
    %1408 = vmatprep.subr.mxu0 %v1023
    %1409 = vmatpush1.msra.mxu0 %v1022
    %1410 = vmatprep.subr.mxu0 %v1027
    %1411 = vmatpush1.msra.mxu0 %v1026
    %1412 = vmatprep.subr.mxu0 %v1031
    %1413 = vmatpush1.msra.mxu0 %v1030
    %1414 = vmatprep.subr.mxu0 %v1035
    %1415 = vmatpush1.msra.mxu0 %v1034
    %1416 = vmatprep.subr.mxu0 %v1039
    %1417 = vmatpush1.msra.mxu0 %v1038
    %1418 = vmatprep.subr.mxu0 %v1043
    %1419 = vmatpush1.msra.mxu0 %v1042
    %1420 = vmatprep.subr.mxu0 %v1047
    %1421 = vmatpush1.msra.mxu0 %v1046
    %1422 = vmatprep.subr.mxu0 %v1051
    %1423 = vmatpush1.msra.mxu0 %v1050
    %1424 = vmatprep.subr.mxu0 %v1055
    %1425 = vmatpush1.msra.mxu0 %v1054
    %1426 = vmatprep.subr.mxu0 %v1059
    %1427 = vmatpush1.msra.mxu0 %v1058
    %1428 = vmatprep.mubr.f32.mxu0 %v925
    %1429 = vmatmul.mubr.f32.gmra.mrb[0].mxu0 %v924
    %v1430 = vpop.f32.mrb[0].mxu0
    %v1431 = vadd.f32 %v1201, %v1430
    %v1432 = vpop.f32.mrb[0].mxu0
    %v1433 = vadd.f32 %v1205, %v1432
    %1434 = vmatprep.mubr.f32.mxu0 %v929
    %1435 = vmatmul.mubr.f32.gmra.mrb[0].mxu0 %v928
    %v1436 = vpop.f32.mrb[0].mxu0
    %v1437 = vadd.f32 %v1201, %v1436
    %v1438 = vpop.f32.mrb[0].mxu0
    %v1439 = vadd.f32 %v1205, %v1438
    %1440 = vdwg.mxu0
    %1441 = vmatprep.subr.mxu0 %v1063
    %1442 = vmatpush1.msra.mxu0 %v1062
    %1443 = vmatprep.subr.mxu0 %v1067
    %1444 = vmatpush1.msra.mxu0 %v1066
    %1445 = vmatprep.subr.mxu0 %v1071
    %1446 = vmatpush1.msra.mxu0 %v1070
    %1447 = vmatprep.subr.mxu0 %v1075
    %1448 = vmatpush1.msra.mxu0 %v1074
    %1449 = vmatprep.subr.mxu0 %v1079
    %1450 = vmatpush1.msra.mxu0 %v1078
    %1451 = vmatprep.subr.mxu0 %v1083
    %1452 = vmatpush1.msra.mxu0 %v1082
    %1453 = vmatprep.subr.mxu0 %v1087
    %1454 = vmatpush1.msra.mxu0 %v1086
    %1455 = vmatprep.subr.mxu0 %v1091
    %1456 = vmatpush1.msra.mxu0 %v1090
    %1457 = vmatprep.subr.mxu0 %v1095
    %1458 = vmatpush1.msra.mxu0 %v1094
    %1459 = vmatprep.subr.mxu0 %v1099
    %1460 = vmatpush1.msra.mxu0 %v1098
    %1461 = vmatprep.subr.mxu0 %v1103
    %1462 = vmatpush1.msra.mxu0 %v1102
    %1463 = vmatprep.subr.mxu0 %v1107
    %1464 = vmatpush1.msra.mxu0 %v1106
    %1465 = vmatprep.subr.mxu0 %v1111
    %1466 = vmatpush1.msra.mxu0 %v1110
    %1467 = vmatprep.subr.mxu0 %v1115
    %1468 = vmatpush1.msra.mxu0 %v1114
    %1469 = vmatprep.subr.mxu0 %v1119
    %1470 = vmatpush1.msra.mxu0 %v1118
    %1471 = vmatprep.subr.mxu0 %v1123
    %1472 = vmatpush1.msra.mxu0 %v1122
    %1473 = vmatprep.subr.mxu0 %v1127
    %1474 = vmatpush1.msra.mxu0 %v1126
    %1475 = vmatprep.subr.mxu0 %v1131
    %1476 = vmatpush1.msra.mxu0 %v1130
    %1477 = vmatprep.subr.mxu0 %v1135
    %1478 = vmatpush1.msra.mxu0 %v1134
    %1479 = vmatprep.subr.mxu0 %v1139
    %1480 = vmatpush1.msra.mxu0 %v1138
    %1481 = vmatprep.subr.mxu0 %v1143
    %1482 = vmatpush1.msra.mxu0 %v1142
    %1483 = vmatprep.subr.mxu0 %v1147
    %1484 = vmatpush1.msra.mxu0 %v1146
    %1485 = vmatprep.subr.mxu0 %v1151
    %1486 = vmatpush1.msra.mxu0 %v1150
    %1487 = vmatprep.subr.mxu0 %v1155
    %1488 = vmatpush1.msra.mxu0 %v1154
    %1489 = vmatprep.subr.mxu0 %v1159
    %1490 = vmatpush1.msra.mxu0 %v1158
    %1491 = vmatprep.subr.mxu0 %v1163
    %1492 = vmatpush1.msra.mxu0 %v1162
    %1493 = vmatprep.subr.mxu0 %v1167
    %1494 = vmatpush1.msra.mxu0 %v1166
    %1495 = vmatprep.subr.mxu0 %v1171
    %1496 = vmatpush1.msra.mxu0 %v1170
    %1497 = vmatprep.subr.mxu0 %v1175
    %1498 = vmatpush1.msra.mxu0 %v1174
    %1499 = vmatprep.subr.mxu0 %v1179
    %1500 = vmatpush1.msra.mxu0 %v1178
    %1501 = vmatprep.subr.mxu0 %v1183
    %1502 = vmatpush1.msra.mxu0 %v1182
    %1503 = vmatprep.subr.mxu0 %v1187
    %1504 = vmatpush1.msra.mxu0 %v1186
    %1505 = vmatprep.mubr.f32.mxu0 %v927
    %1506 = vmatmul.mubr.f32.gmra.mrb[0].mxu0 %v926
    %v1507 = vpop.f32.mrb[0].mxu0
    %v1508 = vadd.f32 %v1431, %v1507
    %v1509 = vpop.f32.mrb[0].mxu0
    %v1510 = vadd.f32 %v1433, %v1509
    %1511 = vmatprep.mubr.f32.mxu0 %v931
    %1512 = vmatmul.mubr.f32.gmra.mrb[0].mxu0 %v930
    %v1513 = vpop.f32.mrb[0].mxu0
    %v1514 = vadd.f32 %v1437, %v1513
    %v1515 = vpop.f32.mrb[0].mxu0
    %v1516 = vadd.f32 %v1439, %v1515
    %1517 = vdwg.mxu0
    %v1518 = vmax.f32 %v1354, 0.0
    %v1519 = vmax.f32 %v1356, 0.0
    %v1520 = vmax.f32 %v1508, 0.0
    %v1521 = vmax.f32 %v1510, 0.0
    %v1522 = vmax.f32 %v1360, 0.0
    %v1523 = vmax.f32 %v1362, 0.0
    %v1524 = vmax.f32 %v1514, 0.0
    %v1525 = vmax.f32 %v1516, 0.0
    %v1526 = vld [vmem:[#allocation8] sm:$0xff]
    %v1527 = vld [vmem:[#allocation8 + $0x8] sm:$0xff]
    %v1528 = vld [vmem:[#allocation8 + $0x10] sm:$0xff]
    %v1529 = vld [vmem:[#allocation8 + $0x18] sm:$0xff]
    %v1530 = vld [vmem:[#allocation8 + $0x20] sm:$0xff]
    %v1531 = vld [vmem:[#allocation8 + $0x28] sm:$0xff]
    %v1532 = vld [vmem:[#allocation8 + $0x30] sm:$0xff]
    %v1533 = vld [vmem:[#allocation8 + $0x38] sm:$0xff]
    %v1534 = vld [vmem:[#allocation8 + $0x40] sm:$0xff]
    %v1535 = vld [vmem:[#allocation8 + $0x48] sm:$0xff]
    %v1536 = vld [vmem:[#allocation8 + $0x50] sm:$0xff]
    %v1537 = vld [vmem:[#allocation8 + $0x58] sm:$0xff]
    %v1538 = vld [vmem:[#allocation8 + $0x60] sm:$0xff]
    %v1539 = vld [vmem:[#allocation8 + $0x68] sm:$0xff]
    %v1540 = vld [vmem:[#allocation8 + $0x70] sm:$0xff]
    %v1541 = vld [vmem:[#allocation8 + $0x78] sm:$0xff]
    %v1542 = vld [vmem:[#allocation8 + $0x80] sm:$0xff]
    %v1543 = vld [vmem:[#allocation8 + $0x88] sm:$0xff]
    %v1544 = vld [vmem:[#allocation8 + $0x90] sm:$0xff]
    %v1545 = vld [vmem:[#allocation8 + $0x98] sm:$0xff]
    %v1546 = vld [vmem:[#allocation8 + $0xa0] sm:$0xff]
    %v1547 = vld [vmem:[#allocation8 + $0xa8] sm:$0xff]
    %v1548 = vld [vmem:[#allocation8 + $0xb0] sm:$0xff]
    %v1549 = vld [vmem:[#allocation8 + $0xb8] sm:$0xff]
    %v1550 = vld [vmem:[#allocation8 + $0xc0] sm:$0xff]
    %v1551 = vld [vmem:[#allocation8 + $0xc8] sm:$0xff]
    %v1552 = vld [vmem:[#allocation8 + $0xd0] sm:$0xff]
    %v1553 = vld [vmem:[#allocation8 + $0xd8] sm:$0xff]
    %v1554 = vld [vmem:[#allocation8 + $0xe0] sm:$0xff]
    %v1555 = vld [vmem:[#allocation8 + $0xe8] sm:$0xff]
    %v1556 = vld [vmem:[#allocation8 + $0xf0] sm:$0xff]
    %v1557 = vld [vmem:[#allocation8 + $0xf8] sm:$0xff]
    %v1558 = vld [vmem:[#allocation8 + $0x100] sm:$0xff]
    %v1559 = vld [vmem:[#allocation8 + $0x108] sm:$0xff]
    %v1560 = vld [vmem:[#allocation8 + $0x110] sm:$0xff]
    %v1561 = vld [vmem:[#allocation8 + $0x118] sm:$0xff]
    %v1562 = vld [vmem:[#allocation8 + $0x120] sm:$0xff]
    %v1563 = vld [vmem:[#allocation8 + $0x128] sm:$0xff]
    %v1564 = vld [vmem:[#allocation8 + $0x130] sm:$0xff]
    %v1565 = vld [vmem:[#allocation8 + $0x138] sm:$0xff]
    %v1566 = vld [vmem:[#allocation8 + $0x140] sm:$0xff]
    %v1567 = vld [vmem:[#allocation8 + $0x148] sm:$0xff]
    %v1568 = vld [vmem:[#allocation8 + $0x150] sm:$0xff]
    %v1569 = vld [vmem:[#allocation8 + $0x158] sm:$0xff]
    %v1570 = vld [vmem:[#allocation8 + $0x160] sm:$0xff]
    %v1571 = vld [vmem:[#allocation8 + $0x168] sm:$0xff]
    %v1572 = vld [vmem:[#allocation8 + $0x170] sm:$0xff]
    %v1573 = vld [vmem:[#allocation8 + $0x178] sm:$0xff]
    %v1574 = vld [vmem:[#allocation8 + $0x180] sm:$0xff]
    %v1575 = vld [vmem:[#allocation8 + $0x188] sm:$0xff]
    %v1576 = vld [vmem:[#allocation8 + $0x190] sm:$0xff]
    %v1577 = vld [vmem:[#allocation8 + $0x198] sm:$0xff]
    %v1578 = vld [vmem:[#allocation8 + $0x1a0] sm:$0xff]
    %v1579 = vld [vmem:[#allocation8 + $0x1a8] sm:$0xff]
    %v1580 = vld [vmem:[#allocation8 + $0x1b0] sm:$0xff]
    %v1581 = vld [vmem:[#allocation8 + $0x1b8] sm:$0xff]
    %v1582 = vld [vmem:[#allocation8 + $0x1c0] sm:$0xff]
    %v1583 = vld [vmem:[#allocation8 + $0x1c8] sm:$0xff]
    %v1584 = vld [vmem:[#allocation8 + $0x1d0] sm:$0xff]
    %v1585 = vld [vmem:[#allocation8 + $0x1d8] sm:$0xff]
    %v1586 = vld [vmem:[#allocation8 + $0x1e0] sm:$0xff]
    %v1587 = vld [vmem:[#allocation8 + $0x1e8] sm:$0xff]
    %v1588 = vld [vmem:[#allocation8 + $0x1f0] sm:$0xff]
    %v1589 = vld [vmem:[#allocation8 + $0x1f8] sm:$0xff]
    %v1590 = vld [vmem:[%s8] sm:$0x1]
    %v1592 = vlaneseq
    %v1593 = vshrl.u32 %v1592, 7
    %v1594 = vsub.s32 0, %v1593
    %v1595 = vrot.slane %v1590, %v1594
    %1597 = vmatprep.subr.mxu0 0.0
    %1598 = vmatpush1.msra.mxu0 %v1526
    %1599 = vmatprep.subr.mxu0 0.0
    %1600 = vmatpush1.msra.mxu0 %v1527
    %1601 = vmatprep.subr.mxu0 0.0
    %1602 = vmatpush1.msra.mxu0 %v1528
    %1603 = vmatprep.subr.mxu0 0.0
    %1604 = vmatpush1.msra.mxu0 %v1529
    %1605 = vmatprep.subr.mxu0 0.0
    %1606 = vmatpush1.msra.mxu0 %v1530
    %1607 = vmatprep.subr.mxu0 0.0
    %1608 = vmatpush1.msra.mxu0 %v1531
    %1609 = vmatprep.subr.mxu0 0.0
    %1610 = vmatpush1.msra.mxu0 %v1532
    %1611 = vmatprep.subr.mxu0 0.0
    %1612 = vmatpush1.msra.mxu0 %v1533
    %1613 = vmatprep.subr.mxu0 0.0
    %1614 = vmatpush1.msra.mxu0 %v1534
    %1615 = vmatprep.subr.mxu0 0.0
    %1616 = vmatpush1.msra.mxu0 %v1535
    %1617 = vmatprep.subr.mxu0 0.0
    %1618 = vmatpush1.msra.mxu0 %v1536
    %1619 = vmatprep.subr.mxu0 0.0
    %1620 = vmatpush1.msra.mxu0 %v1537
    %1621 = vmatprep.subr.mxu0 0.0
    %1622 = vmatpush1.msra.mxu0 %v1538
    %1623 = vmatprep.subr.mxu0 0.0
    %1624 = vmatpush1.msra.mxu0 %v1539
    %1625 = vmatprep.subr.mxu0 0.0
    %1626 = vmatpush1.msra.mxu0 %v1540
    %1627 = vmatprep.subr.mxu0 0.0
    %1628 = vmatpush1.msra.mxu0 %v1541
    %1629 = vmatprep.subr.mxu0 0.0
    %1630 = vmatpush1.msra.mxu0 %v1542
    %1631 = vmatprep.subr.mxu0 0.0
    %1632 = vmatpush1.msra.mxu0 %v1543
    %1633 = vmatprep.subr.mxu0 0.0
    %1634 = vmatpush1.msra.mxu0 %v1544
    %1635 = vmatprep.subr.mxu0 0.0
    %1636 = vmatpush1.msra.mxu0 %v1545
    %1637 = vmatprep.subr.mxu0 0.0
    %1638 = vmatpush1.msra.mxu0 %v1546
    %1639 = vmatprep.subr.mxu0 0.0
    %1640 = vmatpush1.msra.mxu0 %v1547
    %1641 = vmatprep.subr.mxu0 0.0
    %1642 = vmatpush1.msra.mxu0 %v1548
    %1643 = vmatprep.subr.mxu0 0.0
    %1644 = vmatpush1.msra.mxu0 %v1549
    %1645 = vmatprep.subr.mxu0 0.0
    %1646 = vmatpush1.msra.mxu0 %v1550
    %1647 = vmatprep.subr.mxu0 0.0
    %1648 = vmatpush1.msra.mxu0 %v1551
    %1649 = vmatprep.subr.mxu0 0.0
    %1650 = vmatpush1.msra.mxu0 %v1552
    %1651 = vmatprep.subr.mxu0 0.0
    %1652 = vmatpush1.msra.mxu0 %v1553
    %1653 = vmatprep.subr.mxu0 0.0
    %1654 = vmatpush1.msra.mxu0 %v1554
    %1655 = vmatprep.subr.mxu0 0.0
    %1656 = vmatpush1.msra.mxu0 %v1555
    %1657 = vmatprep.subr.mxu0 0.0
    %1658 = vmatpush1.msra.mxu0 %v1556
    %1659 = vmatprep.subr.mxu0 0.0
    %1660 = vmatpush1.msra.mxu0 %v1557
    %1661 = vmatprep.mubr.f32.mxu0 %v1519
    %1662 = vmatmul.mubr.f32.gmra.mrb[0].mxu0 %v1518
    %v1663 = vpop.f32.mrb[0].mxu0
    %v1664 = vadd.f32 %v1595, %v1663
    %v1665 = vpop.f32.mrb[0].mxu0
    %1666 = vmatprep.mubr.f32.mxu0 %v1523
    %1667 = vmatmul.mubr.f32.gmra.mrb[0].mxu0 %v1522
    %v1668 = vpop.f32.mrb[0].mxu0
    %v1669 = vadd.f32 %v1595, %v1668
    %v1670 = vpop.f32.mrb[0].mxu0
    %1671 = vdwg.mxu0
    %1672 = vmatprep.subr.mxu0 0.0
    %1673 = vmatpush1.msra.mxu0 %v1558
    %1674 = vmatprep.subr.mxu0 0.0
    %1675 = vmatpush1.msra.mxu0 %v1559
    %1676 = vmatprep.subr.mxu0 0.0
    %1677 = vmatpush1.msra.mxu0 %v1560
    %1678 = vmatprep.subr.mxu0 0.0
    %1679 = vmatpush1.msra.mxu0 %v1561
    %1680 = vmatprep.subr.mxu0 0.0
    %1681 = vmatpush1.msra.mxu0 %v1562
    %1682 = vmatprep.subr.mxu0 0.0
    %1683 = vmatpush1.msra.mxu0 %v1563
    %1684 = vmatprep.subr.mxu0 0.0
    %1685 = vmatpush1.msra.mxu0 %v1564
    %1686 = vmatprep.subr.mxu0 0.0
    %1687 = vmatpush1.msra.mxu0 %v1565
    %1688 = vmatprep.subr.mxu0 0.0
    %1689 = vmatpush1.msra.mxu0 %v1566
    %1690 = vmatprep.subr.mxu0 0.0
    %1691 = vmatpush1.msra.mxu0 %v1567
    %1692 = vmatprep.subr.mxu0 0.0
    %1693 = vmatpush1.msra.mxu0 %v1568
    %1694 = vmatprep.subr.mxu0 0.0
    %1695 = vmatpush1.msra.mxu0 %v1569
    %1696 = vmatprep.subr.mxu0 0.0
    %1697 = vmatpush1.msra.mxu0 %v1570
    %1698 = vmatprep.subr.mxu0 0.0
    %1699 = vmatpush1.msra.mxu0 %v1571
    %1700 = vmatprep.subr.mxu0 0.0
    %1701 = vmatpush1.msra.mxu0 %v1572
    %1702 = vmatprep.subr.mxu0 0.0
    %1703 = vmatpush1.msra.mxu0 %v1573
    %1704 = vmatprep.subr.mxu0 0.0
    %1705 = vmatpush1.msra.mxu0 %v1574
    %1706 = vmatprep.subr.mxu0 0.0
    %1707 = vmatpush1.msra.mxu0 %v1575
    %1708 = vmatprep.subr.mxu0 0.0
    %1709 = vmatpush1.msra.mxu0 %v1576
    %1710 = vmatprep.subr.mxu0 0.0
    %1711 = vmatpush1.msra.mxu0 %v1577
    %1712 = vmatprep.subr.mxu0 0.0
    %1713 = vmatpush1.msra.mxu0 %v1578
    %1714 = vmatprep.subr.mxu0 0.0
    %1715 = vmatpush1.msra.mxu0 %v1579
    %1716 = vmatprep.subr.mxu0 0.0
    %1717 = vmatpush1.msra.mxu0 %v1580
    %1718 = vmatprep.subr.mxu0 0.0
    %1719 = vmatpush1.msra.mxu0 %v1581
    %1720 = vmatprep.subr.mxu0 0.0
    %1721 = vmatpush1.msra.mxu0 %v1582
    %1722 = vmatprep.subr.mxu0 0.0
    %1723 = vmatpush1.msra.mxu0 %v1583
    %1724 = vmatprep.subr.mxu0 0.0
    %1725 = vmatpush1.msra.mxu0 %v1584
    %1726 = vmatprep.subr.mxu0 0.0
    %1727 = vmatpush1.msra.mxu0 %v1585
    %1728 = vmatprep.subr.mxu0 0.0
    %1729 = vmatpush1.msra.mxu0 %v1586
    %1730 = vmatprep.subr.mxu0 0.0
    %1731 = vmatpush1.msra.mxu0 %v1587
    %1732 = vmatprep.subr.mxu0 0.0
    %1733 = vmatpush1.msra.mxu0 %v1588
    %1734 = vmatprep.subr.mxu0 0.0
    %1735 = vmatpush1.msra.mxu0 %v1589
    %1736 = vmatprep.mubr.f32.mxu0 %v1521
    %1737 = vmatmul.mubr.f32.gmra.mrb[0].mxu0 %v1520
    %v1738 = vpop.f32.mrb[0].mxu0
    %v1739 = vadd.f32 %v1664, %v1738
    %v1740 = vpop.f32.mrb[0].mxu0
    %1741 = vmatprep.mubr.f32.mxu0 %v1525
    %1742 = vmatmul.mubr.f32.gmra.mrb[0].mxu0 %v1524
    %v1743 = vpop.f32.mrb[0].mxu0
    %v1744 = vadd.f32 %v1669, %v1743
    %v1745 = vpop.f32.mrb[0].mxu0
    %1746 = vdwg.mxu0
    %1747 = vst [vmem:[#allocation10] sm:$0xff] %v1739
    %1748 = vst [vmem:[#allocation10 + $0x8] sm:$0xff] %v1744
    // Predicated region
    $region54: #{lidar_feature_extractor_pallas.1} parent=1 // pred_check
      _
    $region55: #{lidar_feature_extractor_pallas.1} parent=1 // pred_check_branch
      %1750 = sbr.rel (0) target = $region57
    $region56: #{lidar_feature_extractor_pallas.1} parent=1 // pred_region
      %s1752 = ssub.s32 256, 256
      %1753 = vsyncadd [#allocation4], %s1752
      %s1754 = sshll.u32 [#allocation10], 4
      %s1755 = int_to_ptr.vmem [resolvable:$true] %s1754
      %1760 = dma.vmem_to_hbm [thread:$0]  %s1755, 256, %s9, [#allocation4], 128, 128, 8
    $region57: #{lidar_feature_extractor_pallas.1} parent=1 // pred_fallthru
      _
    // Predicated region
    $region58: #{lidar_feature_extractor_pallas.1} parent=1 // pred_check
      _
    $region59: #{lidar_feature_extractor_pallas.1} parent=1 // pred_check_branch
      %1762 = sbr.rel (0) target = $region61
    $region60: #{lidar_feature_extractor_pallas.1} parent=1 // pred_region
      %1763 = dma.done [#allocation4], 256
    $region61: #{lidar_feature_extractor_pallas.1} parent=1 // pred_fallthru
      _
    %1764 = vsyncpa [#allocation3], 1
    %1765 = vsyncpa [#allocation6], 1
    %1766 = vsyncpa [#allocation9], 1
    %1767 = vsyncpa [#allocation4], 1

</llo_original>
